<compile_context>
chip_gen: v6e
topology: v6e:2x2x1
jax: 0.10.0
libtpu: 0.0.40
codegen_flags: <defaults>
</compile_context>

<pallas_src>
import jax
import jax.numpy as jnp
from jax import lax
from jax.experimental import pallas as pl
from jax.experimental.pallas import tpu as pltpu

NUM_HEADS = 2
LN_EPS = 1e-5
LANE = 128

PACKED_ORDER = ("w_qkv", "b_qkv", "wo", "vec_h", "w1", "b1", "w2", "b2w3")


def rating_head_kernel(cls_ref, wqkv_ref, bqkv_ref, wo_ref, vech_ref,
                       w1_ref, b1_ref, w2_ref, b2w3_ref, out_ref):
    NHP = wqkv_ref.shape[1] // 3           # NUM_HEADS * HP (padded)
    HP = NHP // NUM_HEADS                  # lane-aligned (padded) head dim

    x = cls_ref[...]                       # CLS rows, (B, H) f32
    x_bf = x.astype(jnp.bfloat16)

    # ---- packed, head-padded, q-pre-scaled in-projection: one MXU matmul ---
    qkv = jnp.dot(x_bf, wqkv_ref[...],
                  preferred_element_type=jnp.float32) + bqkv_ref[...]
    q = qkv[:, 0 * NHP:1 * NHP]            # lane-aligned slices
    k = qkv[:, 1 * NHP:2 * NHP]
    v = qkv[:, 2 * NHP:3 * NHP]

    # ---- per-head attention over the "sequence" == batch axis -------------
    trans_b = (((1,), (1,)), ((), ()))     # contract last dims: q @ k^T
    head_outs = []
    for h in range(NUM_HEADS):
        sl = slice(h * HP, (h + 1) * HP)   # 128-aligned head slice
        qh = q[:, sl].astype(jnp.bfloat16)     # scale already folded into W_q/b_q
        kh = k[:, sl].astype(jnp.bfloat16)
        vh = v[:, sl].astype(jnp.bfloat16)
        # NOTE(review): the last-dim contraction of kh may lower to an XLU
        # vxpose; left as-is since the XLU has slack at these sizes.
        s = lax.dot_general(qh, kh, trans_b,
                            preferred_element_type=jnp.float32)   # (B, B)
        s = s - jnp.max(s, axis=-1, keepdims=True)
        p = jnp.exp(s)
        p = p * pl.reciprocal(jnp.sum(p, axis=-1, keepdims=True), approx=True)
        head_outs.append(jnp.dot(p.astype(jnp.bfloat16), vh,
                                 preferred_element_type=jnp.float32))
    o = jnp.concatenate(head_outs, axis=-1)          # (B, NH*HP), vreg-aligned

    vech = vech_ref[...]                   # rows: bo, gamma, beta
    attn = jnp.dot(o.astype(jnp.bfloat16), wo_ref[...],
                   preferred_element_type=jnp.float32) + vech[0:1, :]

    # ---- residual + LayerNorm (f32 VPU math; dropout == identity) ---------
    y = x + attn
    mean = jnp.mean(y, axis=-1, keepdims=True)
    var = jnp.mean((y - mean) ** 2, axis=-1, keepdims=True)
    yn = (y - mean) * lax.rsqrt(var + LN_EPS)
    yn = yn * vech[1:2, :] + vech[2:3, :]

    # ---- MLP head: H -> 512 -> 128 -> 1 ------------------------------------
    h1 = jnp.maximum(
        jnp.dot(yn.astype(jnp.bfloat16), w1_ref[...],
                preferred_element_type=jnp.float32) + b1_ref[...], 0.0)
    b2w3 = b2w3_ref[...]                   # rows: b2, w3 row, b3 (broadcast)
    h2 = jnp.maximum(
        jnp.dot(h1.astype(jnp.bfloat16), w2_ref[...],
                preferred_element_type=jnp.float32) + b2w3[0:1, :], 0.0)
    # Linear(128, 1) as a VPU multiply + lane reduction (avoid N=1 MXU matmul).
    out = jnp.sum(h2 * b2w3[1:2, :], axis=-1, keepdims=True) + b2w3[2:3, 0:1]

    out_ref[...] = out.astype(out_ref.dtype)


@jax.jit
def rating_predictor_forward(last_hidden_state, packed):
    """last_hidden_state: (B, S, H) float32  ->  (B, 1) float32 rating."""
    B, S, H = last_hidden_state.shape

    # CLS-only DMA: slice in the wrapper so the kernel only pulls (B, H) into
    # VMEM (layout plumbing, not compute hoisting).
    cls = last_hidden_state[:, 0, :]
    args = [cls] + [packed[name] for name in PACKED_ORDER]

    nhp = packed["w_qkv"].shape[1] // 3
    flops = 2 * B * (H * 3 * nhp + NUM_HEADS * B * (nhp // NUM_HEADS) * 2
                     + nhp * H + H * 512 + 512 * 128 + 128)
    transcendentals = NUM_HEADS * B * B + NUM_HEADS * B + B
    bytes_accessed = (B * H * 4 + B * 4
                      + sum(int(packed[n].size) * packed[n].dtype.itemsize
                            for n in PACKED_ORDER))

    # No grid: a single kernel invocation, every operand resident once in VMEM
    # (single-buffered; a 1-step grid would double-buffer for zero overlap).
    # NOTE: at this size every matmul has M=B, so MXU row utilization is low;
    # the kernel is latency-bound — batch more rows per call to recover it.
    return pl.pallas_call(
        rating_head_kernel,
        out_shape=jax.ShapeDtypeStruct((B, 1), jnp.float32),
        compiler_params=pltpu.CompilerParams(
            vmem_limit_bytes=32 * 1024 * 1024),
        cost_estimate=pl.CostEstimate(
            flops=int(flops),
            transcendentals=int(transcendentals),
            bytes_accessed=int(bytes_accessed)),
    )(*args)


def init_params(key, hidden):
    """Synthetic parameters in a PyTorch-equivalent (in, out) layout."""
    ks = jax.random.split(key, 12)

    def w(k, shape, scale=0.05):
        return scale * jax.random.normal(k, shape, jnp.float32)

    in_proj = w(ks[0], (3 * hidden, hidden))   # nn.MultiheadAttention in_proj_weight
    in_bias = w(ks[1], (3 * hidden,))
    wq, wk, wv = jnp.split(in_proj, 3, axis=0)
    bq, bk, bv = jnp.split(in_bias, 3, axis=0)
    wo = w(ks[2], (hidden, hidden))            # out_proj.weight
    bo = w(ks[3], (hidden,))
    gamma = 1.0 + 0.1 * jax.random.normal(ks[4], (hidden,), jnp.float32)
    beta = 0.1 * jax.random.normal(ks[5], (hidden,), jnp.float32)
    w1 = w(ks[6], (512, hidden)); b1 = w(ks[7], (512,))
    w2 = w(ks[8], (128, 512));    b2 = w(ks[9], (128,))
    w3 = w(ks[10], (1, 128));     b3 = w(ks[11], (1,))

    return {
        "wq": wq.T, "wk": wk.T, "wv": wv.T,
        "bq": bq[None, :], "bk": bk[None, :], "bv": bv[None, :],
        "wo": wo.T, "bo": bo[None, :],
        "gamma": gamma[None, :], "beta": beta[None, :],
        "w1": w1.T, "b1": b1[None, :],
        "w2": w2.T, "b2": b2[None, :],
        "w3": w3.T, "b3": b3[None, :],
    }


def pack_params(params, hidden):
    """Repack into the kernel's fused / head-padded / q-pre-scaled bf16 layout."""
    hd = hidden // NUM_HEADS
    hp = -(-hd // LANE) * LANE             # head dim padded to a lane multiple
    nhp = NUM_HEADS * hp
    q_scale = float(hd) ** -0.5            # fold softmax scale into q proj

    w_qkv = jnp.zeros((hidden, 3 * nhp), jnp.float32)
    b_qkv = jnp.zeros((1, 3 * nhp), jnp.float32)
    for m, (wn, bn) in enumerate((("wq", "bq"), ("wk", "bk"), ("wv", "bv"))):
        s = q_scale if m == 0 else 1.0
        for h in range(NUM_HEADS):
            col = (m * NUM_HEADS + h) * hp
            w_qkv = w_qkv.at[:, col:col + hd].set(
                s * params[wn][:, h * hd:(h + 1) * hd])
            b_qkv = b_qkv.at[:, col:col + hd].set(
                s * params[bn][:, h * hd:(h + 1) * hd])

    wo = jnp.zeros((nhp, hidden), jnp.float32)     # padded rows stay exactly 0
    for h in range(NUM_HEADS):
        wo = wo.at[h * hp:h * hp + hd, :].set(
            params["wo"][h * hd:(h + 1) * hd, :])

    vec_h = jnp.concatenate([params["bo"], params["gamma"], params["beta"]],
                            axis=0)                                   # (3, H)
    b2w3 = jnp.concatenate(
        [params["b2"], params["w3"].T,
         jnp.full((1, 128), params["b3"][0, 0], jnp.float32)], axis=0)  # (3, 128)

    return {
        "w_qkv": w_qkv.astype(jnp.bfloat16),
        "b_qkv": b_qkv,
        "wo": wo.astype(jnp.bfloat16),
        "vec_h": vec_h,
        "w1": params["w1"].astype(jnp.bfloat16),
        "b1": params["b1"],
        "w2": params["w2"].astype(jnp.bfloat16),
        "b2": None,                        # unused (lives inside b2w3)
        "b2w3": b2w3,
    } | {}


def reference_forward(last_hidden_state, params):
    """Pure-JAX reference mirroring the kernel's bf16-MXU / f32-VPU math."""
    bf = jnp.bfloat16

    def mm(a, b):
        return jnp.dot(a.astype(bf), b.astype(bf),
                       preferred_element_type=jnp.float32)

    x = last_hidden_state[:, 0, :]
    _, H = x.shape
    hd = H // NUM_HEADS
    q = mm(x, params["wq"]) + params["bq"]
    k = mm(x, params["wk"]) + params["bk"]
    v = mm(x, params["wv"]) + params["bv"]
    outs = []
    for h in range(NUM_HEADS):
        qh, kh, vh = (t[:, h * hd:(h + 1) * hd] for t in (q, k, v))
        s = mm(qh * (hd ** -0.5), kh.T)
        p = jax.nn.softmax(s, axis=-1)
        outs.append(mm(p, vh))
    attn = mm(jnp.concatenate(outs, axis=-1), params["wo"]) + params["bo"]
    y = x + attn
    mean = jnp.mean(y, axis=-1, keepdims=True)
    var = jnp.mean((y - mean) ** 2, axis=-1, keepdims=True)
    yn = (y - mean) / jnp.sqrt(var + LN_EPS) * params["gamma"] + params["beta"]
    h1 = jax.nn.relu(mm(yn, params["w1"]) + params["b1"])
    h2 = jax.nn.relu(mm(h1, params["w2"]) + params["b2"])
    return h2 @ params["w3"] + params["b3"]


if __name__ == "__main__":
    B, S, H = 8, 16, 128                  # small shapes: batch=8, seq=16, hidden=128
    key = jax.random.PRNGKey(0)
    k_hidden, k_params = jax.random.split(key)

    # Synthetic "ERNIE last_hidden_state" (the encoder itself is out of scope).
    last_hidden_state = jax.random.normal(k_hidden, (B, S, H), jnp.float32)
    params = init_params(k_params, H)
    packed = {k: v for k, v in pack_params(params, H).items() if v is not None}

    out = jax.block_until_ready(rating_predictor_forward(last_hidden_state, packed))
    ref = reference_forward(last_hidden_state, params)

    assert out.shape == (B, 1), out.shape
    assert jnp.allclose(out, ref, atol=5e-3, rtol=5e-2), (out, ref)
    print("KERNEL_OK")
</pallas_src>

<mosaic_0001>
module attributes {stable_mosaic.version = 11 : i64} {
  func.func @rating_head_kernel(%arg0: memref<8x128xf32, #tpu.memory_space<vmem>>, %arg1: memref<128x768xbf16, #tpu.memory_space<vmem>>, %arg2: memref<1x768xf32, #tpu.memory_space<vmem>>, %arg3: memref<256x128xbf16, #tpu.memory_space<vmem>>, %arg4: memref<3x128xf32, #tpu.memory_space<vmem>>, %arg5: memref<128x512xbf16, #tpu.memory_space<vmem>>, %arg6: memref<1x512xf32, #tpu.memory_space<vmem>>, %arg7: memref<512x128xbf16, #tpu.memory_space<vmem>>, %arg8: memref<3x128xf32, #tpu.memory_space<vmem>>, %arg9: memref<8x1xf32, #tpu.memory_space<vmem>>) attributes {dimension_semantics = [], scalar_prefetch = 0 : i64, scratch_operands = 0 : i64, tpu.core_type = #tpu.core_type<tc>} {
    %c0 = arith.constant 0 : index
    %c0_0 = arith.constant 0 : index
    %0 = vector.load %arg0[%c0, %c0_0] : memref<8x128xf32, #tpu.memory_space<vmem>>, vector<8x128xf32>
    %1 = arith.truncf %0 : vector<8x128xf32> to vector<8x128xbf16>
    %c0_1 = arith.constant 0 : index
    %c0_2 = arith.constant 0 : index
    %2 = vector.load %arg1[%c0_1, %c0_2] : memref<128x768xbf16, #tpu.memory_space<vmem>>, vector<128x768xbf16>
    %cst = arith.constant dense<0.000000e+00> : vector<8x768xf32>
    %3 = tpu.matmul %1, %2, %cst {dimension_numbers = #tpu.dot_dimension_numbers<[1], [0], [0], [1], [0, 0, 1, 1], [], []>} : vector<8x128xbf16>, vector<128x768xbf16>, vector<8x768xf32> -> vector<8x768xf32>
    %c0_3 = arith.constant 0 : index
    %c0_4 = arith.constant 0 : index
    %4 = vector.load %arg2[%c0_3, %c0_4] : memref<1x768xf32, #tpu.memory_space<vmem>>, vector<1x768xf32>
    %5 = vector.broadcast %4 : vector<1x768xf32> to vector<8x768xf32>
    %6 = arith.addf %3, %5 : vector<8x768xf32>
    %7 = vector.extract_strided_slice %6 {offsets = [0, 0], sizes = [8, 256], strides = [1, 1]} : vector<8x768xf32> to vector<8x256xf32>
    %8 = vector.extract_strided_slice %6 {offsets = [0, 256], sizes = [8, 256], strides = [1, 1]} : vector<8x768xf32> to vector<8x256xf32>
    %9 = vector.extract_strided_slice %6 {offsets = [0, 512], sizes = [8, 256], strides = [1, 1]} : vector<8x768xf32> to vector<8x256xf32>
    %10 = vector.extract_strided_slice %7 {offsets = [0, 0], sizes = [8, 128], strides = [1, 1]} : vector<8x256xf32> to vector<8x128xf32>
    %11 = arith.truncf %10 : vector<8x128xf32> to vector<8x128xbf16>
    %12 = vector.extract_strided_slice %8 {offsets = [0, 0], sizes = [8, 128], strides = [1, 1]} : vector<8x256xf32> to vector<8x128xf32>
    %13 = arith.truncf %12 : vector<8x128xf32> to vector<8x128xbf16>
    %14 = vector.extract_strided_slice %9 {offsets = [0, 0], sizes = [8, 128], strides = [1, 1]} : vector<8x256xf32> to vector<8x128xf32>
    %15 = arith.truncf %14 : vector<8x128xf32> to vector<8x128xbf16>
    %cst_5 = arith.constant dense<0.000000e+00> : vector<8x8xf32>
    %16 = tpu.matmul %11, %13, %cst_5 {dimension_numbers = #tpu.dot_dimension_numbers<[1], [1], [0], [0], [0, 0, 1, 0], [], []>} : vector<8x128xbf16>, vector<8x128xbf16>, vector<8x8xf32> -> vector<8x8xf32>
    %cst_6 = arith.constant dense<0xFF800000> : vector<8xf32>
    %17 = vector.multi_reduction <maximumf>, %16, %cst_6 [1] : vector<8x8xf32> to vector<8xf32>
    %18 = vector.shape_cast %17 : vector<8xf32> to vector<8x1xf32>
    %19 = vector.broadcast %18 : vector<8x1xf32> to vector<8x8xf32>
    %20 = arith.subf %16, %19 : vector<8x8xf32>
    %21 = math.exp %20 : vector<8x8xf32>
    %cst_7 = arith.constant dense<0.000000e+00> : vector<8xf32>
    %22 = vector.multi_reduction <add>, %21, %cst_7 [1] : vector<8x8xf32> to vector<8xf32>
    %23 = vector.shape_cast %22 : vector<8xf32> to vector<8x1xf32>
    %24 = tpu.reciprocal %23 {approx = true} : vector<8x1xf32> -> vector<8x1xf32>
    %25 = vector.broadcast %24 : vector<8x1xf32> to vector<8x8xf32>
    %26 = arith.mulf %21, %25 : vector<8x8xf32>
    %27 = arith.truncf %26 : vector<8x8xf32> to vector<8x8xbf16>
    %cst_8 = arith.constant dense<0.000000e+00> : vector<8x128xf32>
    %28 = tpu.matmul %27, %15, %cst_8 {dimension_numbers = #tpu.dot_dimension_numbers<[1], [0], [0], [1], [0, 0, 1, 1], [], []>} : vector<8x8xbf16>, vector<8x128xbf16>, vector<8x128xf32> -> vector<8x128xf32>
    %29 = vector.extract_strided_slice %7 {offsets = [0, 128], sizes = [8, 128], strides = [1, 1]} : vector<8x256xf32> to vector<8x128xf32>
    %30 = arith.truncf %29 : vector<8x128xf32> to vector<8x128xbf16>
    %31 = vector.extract_strided_slice %8 {offsets = [0, 128], sizes = [8, 128], strides = [1, 1]} : vector<8x256xf32> to vector<8x128xf32>
    %32 = arith.truncf %31 : vector<8x128xf32> to vector<8x128xbf16>
    %33 = vector.extract_strided_slice %9 {offsets = [0, 128], sizes = [8, 128], strides = [1, 1]} : vector<8x256xf32> to vector<8x128xf32>
    %34 = arith.truncf %33 : vector<8x128xf32> to vector<8x128xbf16>
    %cst_9 = arith.constant dense<0.000000e+00> : vector<8x8xf32>
    %35 = tpu.matmul %30, %32, %cst_9 {dimension_numbers = #tpu.dot_dimension_numbers<[1], [1], [0], [0], [0, 0, 1, 0], [], []>} : vector<8x128xbf16>, vector<8x128xbf16>, vector<8x8xf32> -> vector<8x8xf32>
    %cst_10 = arith.constant dense<0xFF800000> : vector<8xf32>
    %36 = vector.multi_reduction <maximumf>, %35, %cst_10 [1] : vector<8x8xf32> to vector<8xf32>
    %37 = vector.shape_cast %36 : vector<8xf32> to vector<8x1xf32>
    %38 = vector.broadcast %37 : vector<8x1xf32> to vector<8x8xf32>
    %39 = arith.subf %35, %38 : vector<8x8xf32>
    %40 = math.exp %39 : vector<8x8xf32>
    %cst_11 = arith.constant dense<0.000000e+00> : vector<8xf32>
    %41 = vector.multi_reduction <add>, %40, %cst_11 [1] : vector<8x8xf32> to vector<8xf32>
    %42 = vector.shape_cast %41 : vector<8xf32> to vector<8x1xf32>
    %43 = tpu.reciprocal %42 {approx = true} : vector<8x1xf32> -> vector<8x1xf32>
    %44 = vector.broadcast %43 : vector<8x1xf32> to vector<8x8xf32>
    %45 = arith.mulf %40, %44 : vector<8x8xf32>
    %46 = arith.truncf %45 : vector<8x8xf32> to vector<8x8xbf16>
    %cst_12 = arith.constant dense<0.000000e+00> : vector<8x128xf32>
    %47 = tpu.matmul %46, %34, %cst_12 {dimension_numbers = #tpu.dot_dimension_numbers<[1], [0], [0], [1], [0, 0, 1, 1], [], []>} : vector<8x8xbf16>, vector<8x128xbf16>, vector<8x128xf32> -> vector<8x128xf32>
    %48 = tpu.concatenate %28, %47 in 1 : vector<8x128xf32>, vector<8x128xf32> -> vector<8x256xf32>
    %c0_13 = arith.constant 0 : index
    %c0_14 = arith.constant 0 : index
    %49 = vector.load %arg4[%c0_13, %c0_14] : memref<3x128xf32, #tpu.memory_space<vmem>>, vector<3x128xf32>
    %50 = arith.truncf %48 : vector<8x256xf32> to vector<8x256xbf16>
    %c0_15 = arith.constant 0 : index
    %c0_16 = arith.constant 0 : index
    %51 = vector.load %arg3[%c0_15, %c0_16] : memref<256x128xbf16, #tpu.memory_space<vmem>>, vector<256x128xbf16>
    %cst_17 = arith.constant dense<0.000000e+00> : vector<8x128xf32>
    %52 = tpu.matmul %50, %51, %cst_17 {dimension_numbers = #tpu.dot_dimension_numbers<[1], [0], [0], [1], [0, 0, 1, 1], [], []>} : vector<8x256xbf16>, vector<256x128xbf16>, vector<8x128xf32> -> vector<8x128xf32>
    %53 = vector.extract_strided_slice %49 {offsets = [0, 0], sizes = [1, 128], strides = [1, 1]} : vector<3x128xf32> to vector<1x128xf32>
    %54 = vector.broadcast %53 : vector<1x128xf32> to vector<8x128xf32>
    %55 = arith.addf %52, %54 : vector<8x128xf32>
    %56 = arith.addf %0, %55 : vector<8x128xf32>
    %cst_18 = arith.constant dense<0.000000e+00> : vector<8xf32>
    %57 = vector.multi_reduction <add>, %56, %cst_18 [1] : vector<8x128xf32> to vector<8xf32>
    %58 = vector.shape_cast %57 : vector<8xf32> to vector<8x1xf32>
    %cst_19 = arith.constant 1.280000e+02 : f32
    %59 = vector.broadcast %cst_19 : f32 to vector<8x1xf32>
    %60 = arith.divf %58, %59 : vector<8x1xf32>
    %61 = vector.broadcast %60 : vector<8x1xf32> to vector<8x128xf32>
    %62 = arith.subf %56, %61 : vector<8x128xf32>
    %63 = arith.mulf %62, %62 : vector<8x128xf32>
    %cst_20 = arith.constant dense<0.000000e+00> : vector<8xf32>
    %64 = vector.multi_reduction <add>, %63, %cst_20 [1] : vector<8x128xf32> to vector<8xf32>
    %65 = vector.shape_cast %64 : vector<8xf32> to vector<8x1xf32>
    %cst_21 = arith.constant 1.280000e+02 : f32
    %66 = vector.broadcast %cst_21 : f32 to vector<8x1xf32>
    %67 = arith.divf %65, %66 : vector<8x1xf32>
    %68 = vector.broadcast %60 : vector<8x1xf32> to vector<8x128xf32>
    %69 = arith.subf %56, %68 : vector<8x128xf32>
    %cst_22 = arith.constant 9.99999974E-6 : f32
    %70 = vector.broadcast %cst_22 : f32 to vector<8x1xf32>
    %71 = arith.addf %67, %70 : vector<8x1xf32>
    %72 = math.rsqrt %71 : vector<8x1xf32>
    %73 = vector.broadcast %72 : vector<8x1xf32> to vector<8x128xf32>
    %74 = arith.mulf %69, %73 : vector<8x128xf32>
    %75 = vector.extract_strided_slice %49 {offsets = [1, 0], sizes = [1, 128], strides = [1, 1]} : vector<3x128xf32> to vector<1x128xf32>
    %76 = vector.broadcast %75 : vector<1x128xf32> to vector<8x128xf32>
    %77 = arith.mulf %74, %76 : vector<8x128xf32>
    %78 = vector.extract_strided_slice %49 {offsets = [2, 0], sizes = [1, 128], strides = [1, 1]} : vector<3x128xf32> to vector<1x128xf32>
    %79 = vector.broadcast %78 : vector<1x128xf32> to vector<8x128xf32>
    %80 = arith.addf %77, %79 : vector<8x128xf32>
    %81 = arith.truncf %80 : vector<8x128xf32> to vector<8x128xbf16>
    %c0_23 = arith.constant 0 : index
    %c0_24 = arith.constant 0 : index
    %82 = vector.load %arg5[%c0_23, %c0_24] : memref<128x512xbf16, #tpu.memory_space<vmem>>, vector<128x512xbf16>
    %cst_25 = arith.constant dense<0.000000e+00> : vector<8x512xf32>
    %83 = tpu.matmul %81, %82, %cst_25 {dimension_numbers = #tpu.dot_dimension_numbers<[1], [0], [0], [1], [0, 0, 1, 1], [], []>} : vector<8x128xbf16>, vector<128x512xbf16>, vector<8x512xf32> -> vector<8x512xf32>
    %c0_26 = arith.constant 0 : index
    %c0_27 = arith.constant 0 : index
    %84 = vector.load %arg6[%c0_26, %c0_27] : memref<1x512xf32, #tpu.memory_space<vmem>>, vector<1x512xf32>
    %85 = vector.broadcast %84 : vector<1x512xf32> to vector<8x512xf32>
    %86 = arith.addf %83, %85 : vector<8x512xf32>
    %cst_28 = arith.constant 0.000000e+00 : f32
    %87 = vector.broadcast %cst_28 : f32 to vector<8x512xf32>
    %88 = arith.maximumf %86, %87 : vector<8x512xf32>
    %c0_29 = arith.constant 0 : index
    %c0_30 = arith.constant 0 : index
    %89 = vector.load %arg8[%c0_29, %c0_30] : memref<3x128xf32, #tpu.memory_space<vmem>>, vector<3x128xf32>
    %90 = arith.truncf %88 : vector<8x512xf32> to vector<8x512xbf16>
    %c0_31 = arith.constant 0 : index
    %c0_32 = arith.constant 0 : index
    %91 = vector.load %arg7[%c0_31, %c0_32] : memref<512x128xbf16, #tpu.memory_space<vmem>>, vector<512x128xbf16>
    %cst_33 = arith.constant dense<0.000000e+00> : vector<8x128xf32>
    %92 = tpu.matmul %90, %91, %cst_33 {dimension_numbers = #tpu.dot_dimension_numbers<[1], [0], [0], [1], [0, 0, 1, 1], [], []>} : vector<8x512xbf16>, vector<512x128xbf16>, vector<8x128xf32> -> vector<8x128xf32>
    %93 = vector.extract_strided_slice %89 {offsets = [0, 0], sizes = [1, 128], strides = [1, 1]} : vector<3x128xf32> to vector<1x128xf32>
    %94 = vector.broadcast %93 : vector<1x128xf32> to vector<8x128xf32>
    %95 = arith.addf %92, %94 : vector<8x128xf32>
    %cst_34 = arith.constant 0.000000e+00 : f32
    %96 = vector.broadcast %cst_34 : f32 to vector<8x128xf32>
    %97 = arith.maximumf %95, %96 : vector<8x128xf32>
    %98 = vector.extract_strided_slice %89 {offsets = [1, 0], sizes = [1, 128], strides = [1, 1]} : vector<3x128xf32> to vector<1x128xf32>
    %99 = vector.broadcast %98 : vector<1x128xf32> to vector<8x128xf32>
    %100 = arith.mulf %97, %99 : vector<8x128xf32>
    %cst_35 = arith.constant dense<0.000000e+00> : vector<8xf32>
    %101 = vector.multi_reduction <add>, %100, %cst_35 [1] : vector<8x128xf32> to vector<8xf32>
    %102 = vector.shape_cast %101 : vector<8xf32> to vector<8x1xf32>
    %103 = vector.extract_strided_slice %89 {offsets = [2, 0], sizes = [1, 1], strides = [1, 1]} : vector<3x128xf32> to vector<1x1xf32>
    %104 = vector.broadcast %103 : vector<1x1xf32> to vector<8x1xf32>
    %105 = arith.addf %102, %104 : vector<8x1xf32>
    %c0_36 = arith.constant 0 : index
    %c0_37 = arith.constant 0 : index
    %106 = vector.load %arg9[%c0_36, %c0_37] : memref<8x1xf32, #tpu.memory_space<vmem>>, vector<8x1xf32>
    tpu.vector_store %arg9[%c0_36, %c0_37], %105 {strides = array<i32>} : memref<8x1xf32, #tpu.memory_space<vmem>>, vector<8x1xf32>,
    return
  }
}

</mosaic_0001>

<llo_original>
// kernel: rating_predictor_forward.1
$region0: #{rating_predictor_forward.1}
  #allocation0 [shape = 'u32[]', space=smem, size = 0x4, offset = 0x4, fixed_abs, tag = 'smem constant byte address 0x4 - core index']
  #allocation1 [shape = 'u32[144,128]{1,0:T(1,128)}', space=vmem, size = 0x12000, scoped, tag = 'internal scratch']
  %s0 = inlined_call_operand.vmem [shape: f32[8,128], index: 0, kind: input, shape index: {}]
  %s1 = inlined_call_operand.hbm [shape: bf16[128,768], index: 1, kind: input, shape index: {}]
  %s2 = inlined_call_operand.vmem [shape: f32[1,768], index: 2, kind: input, shape index: {}]
  %s3 = inlined_call_operand.hbm [shape: bf16[256,128], index: 3, kind: input, shape index: {}]
  %s4 = inlined_call_operand.vmem [shape: f32[3,128], index: 4, kind: input, shape index: {}]
  %s5 = inlined_call_operand.hbm [shape: bf16[128,512], index: 5, kind: input, shape index: {}]
  %s6 = inlined_call_operand.vmem [shape: f32[1,512], index: 6, kind: input, shape index: {}]
  %s7 = inlined_call_operand.hbm [shape: bf16[512,128], index: 7, kind: input, shape index: {}]
  %s8 = inlined_call_operand.vmem [shape: f32[3,128], index: 8, kind: input, shape index: {}]
  %s9 = inlined_call_operand.vmem [shape: f32[8,1], index: 9, kind: output, shape index: {}]
  %s10 = sld [smem:[#allocation0]]
  $region62: #{rating_predictor_forward.1} parent=0
    _
  %s12 = ssub.s32 1, %s10
  %s13 = scalar_select 0, %s12, %s10
  $region1: #{rating_predictor_forward.1} parent=0
    #allocation2 [shape = 'u8[196608]{0}', space=vmem, size = 0x30000, scoped, tag = 'input window, operand 1, single buffered']
    #allocation3 [shape = 's32[1]{0}', space=sflag, size = 0x4, scoped, tag = 'scoped memory for rating_predictor_forward.1']
    #allocation4 [shape = 'u8[65536]{0}', space=vmem, size = 0x10000, scoped, tag = 'input window, operand 3, single buffered']
    #allocation5 [shape = 's32[1]{0}', space=sflag, size = 0x4, scoped, tag = 'scoped memory for rating_predictor_forward.1']
    #allocation6 [shape = 'u8[131072]{0}', space=vmem, size = 0x20000, scoped, tag = 'input window, operand 5, single buffered']
    #allocation7 [shape = 'u8[131072]{0}', space=vmem, size = 0x20000, scoped, tag = 'input window, operand 7, single buffered']
    #allocation8 [shape = 's32[1]{0}', space=sflag, size = 0x4, scoped, tag = 'scoped memory for rating_predictor_forward.1']
    %14 = vsyncpa [#allocation3], 0
    %15 = vsyncpa [#allocation5], 0
    %16 = vsyncpa [#allocation8], 0
    // Predicated region
    $region2: #{rating_predictor_forward.1} parent=1 // pred_check
      _
    $region3: #{rating_predictor_forward.1} parent=1 // pred_check_branch
      %18 = sbr.rel (0) target = $region5
    $region4: #{rating_predictor_forward.1} parent=1 // pred_region
      _
    $region5: #{rating_predictor_forward.1} parent=1 // pred_fallthru
      _
    // Predicated region
    $region6: #{rating_predictor_forward.1} parent=1 // pred_check
      _
    $region7: #{rating_predictor_forward.1} parent=1 // pred_check_branch
      %20 = sbr.rel (0) target = $region9
    $region8: #{rating_predictor_forward.1} parent=1 // pred_region
      %s22 = ssub.s32 6144, 6144
      %23 = vsyncadd [#allocation3], %s22
      %s24 = sshll.u32 [#allocation2], 4
      %s25 = int_to_ptr.vmem [resolvable:$true] %s24
      %30 = dma.hbm_to_vmem [thread:$0]  %s1, 6144, %s25, [#allocation3], 384, 384, 24
    $region9: #{rating_predictor_forward.1} parent=1 // pred_fallthru
      _
    // Predicated region
    $region10: #{rating_predictor_forward.1} parent=1 // pred_check
      _
    $region11: #{rating_predictor_forward.1} parent=1 // pred_check_branch
      %32 = sbr.rel (0) target = $region13
    $region12: #{rating_predictor_forward.1} parent=1 // pred_region
      _
    $region13: #{rating_predictor_forward.1} parent=1 // pred_fallthru
      _
    // Predicated region
    $region14: #{rating_predictor_forward.1} parent=1 // pred_check
      _
    $region15: #{rating_predictor_forward.1} parent=1 // pred_check_branch
      %34 = sbr.rel (0) target = $region17
    $region16: #{rating_predictor_forward.1} parent=1 // pred_region
      %s36 = ssub.s32 2048, 2048
      %37 = vsyncadd [#allocation5], %s36
      %s38 = sshll.u32 [#allocation4], 4
      %s39 = int_to_ptr.vmem [resolvable:$true] %s38
      %44 = dma.hbm_to_vmem [thread:$0]  %s3, 2048, %s39, [#allocation5], 64, 64, 4
    $region17: #{rating_predictor_forward.1} parent=1 // pred_fallthru
      _
    // Predicated region
    $region18: #{rating_predictor_forward.1} parent=1 // pred_check
      _
    $region19: #{rating_predictor_forward.1} parent=1 // pred_check_branch
      %46 = sbr.rel (0) target = $region21
    $region20: #{rating_predictor_forward.1} parent=1 // pred_region
      _
    $region21: #{rating_predictor_forward.1} parent=1 // pred_fallthru
      _
    // Predicated region
    $region22: #{rating_predictor_forward.1} parent=1 // pred_check
      _
    $region23: #{rating_predictor_forward.1} parent=1 // pred_check_branch
      %48 = sbr.rel (0) target = $region25
    $region24: #{rating_predictor_forward.1} parent=1 // pred_region
      %s50 = ssub.s32 4096, 4096
      %51 = vsyncadd [#allocation5], %s50
      %s52 = sshll.u32 [#allocation6], 4
      %s53 = int_to_ptr.vmem [resolvable:$true] %s52
      %58 = dma.hbm_to_vmem [thread:$0]  %s5, 4096, %s53, [#allocation5], 256, 256, 16
    $region25: #{rating_predictor_forward.1} parent=1 // pred_fallthru
      _
    // Predicated region
    $region26: #{rating_predictor_forward.1} parent=1 // pred_check
      _
    $region27: #{rating_predictor_forward.1} parent=1 // pred_check_branch
      %60 = sbr.rel (0) target = $region29
    $region28: #{rating_predictor_forward.1} parent=1 // pred_region
      _
    $region29: #{rating_predictor_forward.1} parent=1 // pred_fallthru
      _
    // Predicated region
    $region30: #{rating_predictor_forward.1} parent=1 // pred_check
      _
    $region31: #{rating_predictor_forward.1} parent=1 // pred_check_branch
      %62 = sbr.rel (0) target = $region33
    $region32: #{rating_predictor_forward.1} parent=1 // pred_region
      %s64 = ssub.s32 4096, 4096
      %65 = vsyncadd [#allocation8], %s64
      %s66 = sshll.u32 [#allocation7], 4
      %s67 = int_to_ptr.vmem [resolvable:$true] %s66
      %72 = dma.hbm_to_vmem [thread:$0]  %s7, 4096, %s67, [#allocation8], 64, 64, 4
    $region33: #{rating_predictor_forward.1} parent=1 // pred_fallthru
      _
    // Predicated region
    $region34: #{rating_predictor_forward.1} parent=1 // pred_check
      _
    $region35: #{rating_predictor_forward.1} parent=1 // pred_check_branch
      %74 = sbr.rel (0) target = $region37
    $region36: #{rating_predictor_forward.1} parent=1 // pred_region
      _
    $region37: #{rating_predictor_forward.1} parent=1 // pred_fallthru
      _
    // Predicated region
    $region38: #{rating_predictor_forward.1} parent=1 // pred_check
      _
    $region39: #{rating_predictor_forward.1} parent=1 // pred_check_branch
      %76 = sbr.rel (0) target = $region41
    $region40: #{rating_predictor_forward.1} parent=1 // pred_region
      %77 = dma.done [#allocation3], 6144
    $region41: #{rating_predictor_forward.1} parent=1 // pred_fallthru
      _
    // Predicated region
    $region42: #{rating_predictor_forward.1} parent=1 // pred_check
      _
    $region43: #{rating_predictor_forward.1} parent=1 // pred_check_branch
      %79 = sbr.rel (0) target = $region45
    $region44: #{rating_predictor_forward.1} parent=1 // pred_region
      %80 = dma.done [#allocation5], 2048
    $region45: #{rating_predictor_forward.1} parent=1 // pred_fallthru
      _
    // Predicated region
    $region46: #{rating_predictor_forward.1} parent=1 // pred_check
      _
    $region47: #{rating_predictor_forward.1} parent=1 // pred_check_branch
      %82 = sbr.rel (0) target = $region49
    $region48: #{rating_predictor_forward.1} parent=1 // pred_region
      %83 = dma.done [#allocation5], 4096
    $region49: #{rating_predictor_forward.1} parent=1 // pred_fallthru
      _
    // Predicated region
    $region50: #{rating_predictor_forward.1} parent=1 // pred_check
      _
    $region51: #{rating_predictor_forward.1} parent=1 // pred_check_branch
      %85 = sbr.rel (0) target = $region53
    $region52: #{rating_predictor_forward.1} parent=1 // pred_region
      %86 = dma.done [#allocation8], 4096
    $region53: #{rating_predictor_forward.1} parent=1 // pred_fallthru
      _
    %v88 = vld [vmem:[%s0] sm:$0xff]
    %v89 = vpack.c.bf16 %v88, %v88
    %v90 = vld [vmem:[#allocation2] sm:$0xff]
    %v91 = vld [vmem:[#allocation2 + $0x8] sm:$0xff]
    %v92 = vld [vmem:[#allocation2 + $0x10] sm:$0xff]
    %v93 = vld [vmem:[#allocation2 + $0x18] sm:$0xff]
    %v94 = vld [vmem:[#allocation2 + $0x20] sm:$0xff]
    %v95 = vld [vmem:[#allocation2 + $0x28] sm:$0xff]
    %v96 = vld [vmem:[#allocation2 + $0x30] sm:$0xff]
    %v97 = vld [vmem:[#allocation2 + $0x38] sm:$0xff]
    %v98 = vld [vmem:[#allocation2 + $0x40] sm:$0xff]
    %v99 = vld [vmem:[#allocation2 + $0x48] sm:$0xff]
    %v100 = vld [vmem:[#allocation2 + $0x50] sm:$0xff]
    %v101 = vld [vmem:[#allocation2 + $0x58] sm:$0xff]
    %v102 = vld [vmem:[#allocation2 + $0x60] sm:$0xff]
    %v103 = vld [vmem:[#allocation2 + $0x68] sm:$0xff]
    %v104 = vld [vmem:[#allocation2 + $0x70] sm:$0xff]
    %v105 = vld [vmem:[#allocation2 + $0x78] sm:$0xff]
    %v106 = vld [vmem:[#allocation2 + $0x80] sm:$0xff]
    %v107 = vld [vmem:[#allocation2 + $0x88] sm:$0xff]
    %v108 = vld [vmem:[#allocation2 + $0x90] sm:$0xff]
    %v109 = vld [vmem:[#allocation2 + $0x98] sm:$0xff]
    %v110 = vld [vmem:[#allocation2 + $0xa0] sm:$0xff]
    %v111 = vld [vmem:[#allocation2 + $0xa8] sm:$0xff]
    %v112 = vld [vmem:[#allocation2 + $0xb0] sm:$0xff]
    %v113 = vld [vmem:[#allocation2 + $0xb8] sm:$0xff]
    %v114 = vld [vmem:[#allocation2 + $0xc0] sm:$0xff]
    %v115 = vld [vmem:[#allocation2 + $0xc8] sm:$0xff]
    %v116 = vld [vmem:[#allocation2 + $0xd0] sm:$0xff]
    %v117 = vld [vmem:[#allocation2 + $0xd8] sm:$0xff]
    %v118 = vld [vmem:[#allocation2 + $0xe0] sm:$0xff]
    %v119 = vld [vmem:[#allocation2 + $0xe8] sm:$0xff]
    %v120 = vld [vmem:[#allocation2 + $0xf0] sm:$0xff]
    %v121 = vld [vmem:[#allocation2 + $0xf8] sm:$0xff]
    %v122 = vld [vmem:[#allocation2 + $0x100] sm:$0xff]
    %v123 = vld [vmem:[#allocation2 + $0x108] sm:$0xff]
    %v124 = vld [vmem:[#allocation2 + $0x110] sm:$0xff]
    %v125 = vld [vmem:[#allocation2 + $0x118] sm:$0xff]
    %v126 = vld [vmem:[#allocation2 + $0x120] sm:$0xff]
    %v127 = vld [vmem:[#allocation2 + $0x128] sm:$0xff]
    %v128 = vld [vmem:[#allocation2 + $0x130] sm:$0xff]
    %v129 = vld [vmem:[#allocation2 + $0x138] sm:$0xff]
    %v130 = vld [vmem:[#allocation2 + $0x140] sm:$0xff]
    %v131 = vld [vmem:[#allocation2 + $0x148] sm:$0xff]
    %v132 = vld [vmem:[#allocation2 + $0x150] sm:$0xff]
    %v133 = vld [vmem:[#allocation2 + $0x158] sm:$0xff]
    %v134 = vld [vmem:[#allocation2 + $0x160] sm:$0xff]
    %v135 = vld [vmem:[#allocation2 + $0x168] sm:$0xff]
    %v136 = vld [vmem:[#allocation2 + $0x170] sm:$0xff]
    %v137 = vld [vmem:[#allocation2 + $0x178] sm:$0xff]
    %v138 = vld [vmem:[%s2] sm:$0x3f]
    %v140 = vlaneseq
    %v141 = vshrl.u32 %v140, 7
    %v142 = vsub.s32 0, %v141
    %v143 = vrot.slane %v138, %v142
    %v144 = vlaneseq
    %v145 = vshrl.u32 %v144, 7
    %v146 = vsub.s32 1, %v145
    %v147 = vrot.slane %v138, %v146
    %v148 = vlaneseq
    %v149 = vshrl.u32 %v148, 7
    %v150 = vsub.s32 2, %v149
    %v151 = vrot.slane %v138, %v150
    %v152 = vlaneseq
    %v153 = vshrl.u32 %v152, 7
    %v154 = vsub.s32 3, %v153
    %v155 = vrot.slane %v138, %v154
    %v156 = vlaneseq
    %v157 = vshrl.u32 %v156, 7
    %v158 = vsub.s32 4, %v157
    %v159 = vrot.slane %v138, %v158
    %v160 = vlaneseq
    %v161 = vshrl.u32 %v160, 7
    %v162 = vsub.s32 5, %v161
    %v163 = vrot.slane %v138, %v162
    %v218 = vunpack.c.l.b16 %v90
    %v219 = vunpack.c.h.b16 %v90
    %v220 = vunpack.c.l.b16 %v91
    %v221 = vunpack.c.h.b16 %v91
    %v222 = vunpack.c.l.b16 %v92
    %v223 = vunpack.c.h.b16 %v92
    %v224 = vunpack.c.l.b16 %v93
    %v225 = vunpack.c.h.b16 %v93
    %v226 = vunpack.c.l.b16 %v94
    %v227 = vunpack.c.h.b16 %v94
    %v228 = vunpack.c.l.b16 %v95
    %v229 = vunpack.c.h.b16 %v95
    %v230 = vunpack.c.l.b16 %v96
    %v231 = vunpack.c.h.b16 %v96
    %v232 = vunpack.c.l.b16 %v97
    %v233 = vunpack.c.h.b16 %v97
    %v234 = vunpack.c.l.b16 %v98
    %v235 = vunpack.c.h.b16 %v98
    %v236 = vunpack.c.l.b16 %v99
    %v237 = vunpack.c.h.b16 %v99
    %v238 = vunpack.c.l.b16 %v100
    %v239 = vunpack.c.h.b16 %v100
    %v240 = vunpack.c.l.b16 %v101
    %v241 = vunpack.c.h.b16 %v101
    %v242 = vunpack.c.l.b16 %v102
    %v243 = vunpack.c.h.b16 %v102
    %v244 = vunpack.c.l.b16 %v103
    %v245 = vunpack.c.h.b16 %v103
    %v246 = vunpack.c.l.b16 %v104
    %v247 = vunpack.c.h.b16 %v104
    %v248 = vunpack.c.l.b16 %v105
    %v249 = vunpack.c.h.b16 %v105
    %v250 = vunpack.c.l.b16 %v106
    %v251 = vunpack.c.h.b16 %v106
    %v252 = vunpack.c.l.b16 %v107
    %v253 = vunpack.c.h.b16 %v107
    %v254 = vunpack.c.l.b16 %v108
    %v255 = vunpack.c.h.b16 %v108
    %v256 = vunpack.c.l.b16 %v109
    %v257 = vunpack.c.h.b16 %v109
    %v258 = vunpack.c.l.b16 %v110
    %v259 = vunpack.c.h.b16 %v110
    %v260 = vunpack.c.l.b16 %v111
    %v261 = vunpack.c.h.b16 %v111
    %v262 = vunpack.c.l.b16 %v112
    %v263 = vunpack.c.h.b16 %v112
    %v264 = vunpack.c.l.b16 %v113
    %v265 = vunpack.c.h.b16 %v113
    %v266 = vunpack.c.l.b16 %v114
    %v267 = vunpack.c.h.b16 %v114
    %v268 = vunpack.c.l.b16 %v115
    %v269 = vunpack.c.h.b16 %v115
    %v270 = vunpack.c.l.b16 %v116
    %v271 = vunpack.c.h.b16 %v116
    %v272 = vunpack.c.l.b16 %v117
    %v273 = vunpack.c.h.b16 %v117
    %v274 = vunpack.c.l.b16 %v118
    %v275 = vunpack.c.h.b16 %v118
    %v276 = vunpack.c.l.b16 %v119
    %v277 = vunpack.c.h.b16 %v119
    %v278 = vunpack.c.l.b16 %v120
    %v279 = vunpack.c.h.b16 %v120
    %v280 = vunpack.c.l.b16 %v121
    %v281 = vunpack.c.h.b16 %v121
    %v282 = vunpack.c.l.b16 %v122
    %v283 = vunpack.c.h.b16 %v122
    %v284 = vunpack.c.l.b16 %v123
    %v285 = vunpack.c.h.b16 %v123
    %v286 = vunpack.c.l.b16 %v124
    %v287 = vunpack.c.h.b16 %v124
    %v288 = vunpack.c.l.b16 %v125
    %v289 = vunpack.c.h.b16 %v125
    %v290 = vunpack.c.l.b16 %v126
    %v291 = vunpack.c.h.b16 %v126
    %v292 = vunpack.c.l.b16 %v127
    %v293 = vunpack.c.h.b16 %v127
    %v294 = vunpack.c.l.b16 %v128
    %v295 = vunpack.c.h.b16 %v128
    %v296 = vunpack.c.l.b16 %v129
    %v297 = vunpack.c.h.b16 %v129
    %v298 = vunpack.c.l.b16 %v130
    %v299 = vunpack.c.h.b16 %v130
    %v300 = vunpack.c.l.b16 %v131
    %v301 = vunpack.c.h.b16 %v131
    %v302 = vunpack.c.l.b16 %v132
    %v303 = vunpack.c.h.b16 %v132
    %v304 = vunpack.c.l.b16 %v133
    %v305 = vunpack.c.h.b16 %v133
    %v306 = vunpack.c.l.b16 %v134
    %v307 = vunpack.c.h.b16 %v134
    %v308 = vunpack.c.l.b16 %v135
    %v309 = vunpack.c.h.b16 %v135
    %v310 = vunpack.c.l.b16 %v136
    %v311 = vunpack.c.h.b16 %v136
    %v312 = vunpack.c.l.b16 %v137
    %v313 = vunpack.c.h.b16 %v137
    %v314 = vpack.c.b16 %v224, %v218
    %v315 = vpack.c.b16 %v225, %v219
    %v316 = vpack.c.b16 %v226, %v220
    %v317 = vpack.c.b16 %v227, %v221
    %v318 = vpack.c.b16 %v228, %v222
    %v319 = vpack.c.b16 %v229, %v223
    %v320 = vpack.c.b16 %v236, %v230
    %v321 = vpack.c.b16 %v237, %v231
    %v322 = vpack.c.b16 %v238, %v232
    %v323 = vpack.c.b16 %v239, %v233
    %v324 = vpack.c.b16 %v240, %v234
    %v325 = vpack.c.b16 %v241, %v235
    %v326 = vpack.c.b16 %v248, %v242
    %v327 = vpack.c.b16 %v249, %v243
    %v328 = vpack.c.b16 %v250, %v244
    %v329 = vpack.c.b16 %v251, %v245
    %v330 = vpack.c.b16 %v252, %v246
    %v331 = vpack.c.b16 %v253, %v247
    %v332 = vpack.c.b16 %v260, %v254
    %v333 = vpack.c.b16 %v261, %v255
    %v334 = vpack.c.b16 %v262, %v256
    %v335 = vpack.c.b16 %v263, %v257
    %v336 = vpack.c.b16 %v264, %v258
    %v337 = vpack.c.b16 %v265, %v259
    %v338 = vpack.c.b16 %v272, %v266
    %v339 = vpack.c.b16 %v273, %v267
    %v340 = vpack.c.b16 %v274, %v268
    %v341 = vpack.c.b16 %v275, %v269
    %v342 = vpack.c.b16 %v276, %v270
    %v343 = vpack.c.b16 %v277, %v271
    %v344 = vpack.c.b16 %v284, %v278
    %v345 = vpack.c.b16 %v285, %v279
    %v346 = vpack.c.b16 %v286, %v280
    %v347 = vpack.c.b16 %v287, %v281
    %v348 = vpack.c.b16 %v288, %v282
    %v349 = vpack.c.b16 %v289, %v283
    %v350 = vpack.c.b16 %v296, %v290
    %v351 = vpack.c.b16 %v297, %v291
    %v352 = vpack.c.b16 %v298, %v292
    %v353 = vpack.c.b16 %v299, %v293
    %v354 = vpack.c.b16 %v300, %v294
    %v355 = vpack.c.b16 %v301, %v295
    %v356 = vpack.c.b16 %v308, %v302
    %v357 = vpack.c.b16 %v309, %v303
    %v358 = vpack.c.b16 %v310, %v304
    %v359 = vpack.c.b16 %v311, %v305
    %v360 = vpack.c.b16 %v312, %v306
    %v361 = vpack.c.b16 %v313, %v307
    %410 = vmatprep.subr.bf16.mxu0 %v357
    %411 = vmatpush1.bf16.msra.mxu0 %v356
    %412 = vmatprep.subr.bf16.mxu0 %v351
    %413 = vmatpush1.bf16.msra.mxu0 %v350
    %414 = vmatprep.subr.bf16.mxu0 %v345
    %415 = vmatpush1.bf16.msra.mxu0 %v344
    %416 = vmatprep.subr.bf16.mxu0 %v339
    %417 = vmatpush1.bf16.msra.mxu0 %v338
    %418 = vmatprep.subr.bf16.mxu0 %v333
    %419 = vmatpush1.bf16.msra.mxu0 %v332
    %420 = vmatprep.subr.bf16.mxu0 %v327
    %421 = vmatpush1.bf16.msra.mxu0 %v326
    %422 = vmatprep.subr.bf16.mxu0 %v321
    %423 = vmatpush1.bf16.msra.mxu0 %v320
    %424 = vmatprep.subr.bf16.mxu0 %v315
    %425 = vmatpush1.bf16.msra.mxu0 %v314
    %426 = vmatprep.subr.bf16.mxu0 0
    %427 = vmatpush2.bf16.msra.mxu0 0
    %428 = vmatprep.subr.bf16.mxu0 0
    %429 = vmatpush2.bf16.msra.mxu0 0
    %430 = vmatprep.subr.bf16.mxu0 0
    %431 = vmatpush2.bf16.msra.mxu0 0
    %432 = vmatprep.subr.bf16.mxu0 0
    %433 = vmatpush2.bf16.msra.mxu0 0
    %434 = vmatprep.subr.bf16.mxu0 0
    %435 = vmatpush2.bf16.msra.mxu0 0
    %436 = vmatprep.subr.bf16.mxu0 0
    %437 = vmatpush2.bf16.msra.mxu0 0
    %438 = vmatprep.subr.bf16.mxu0 0
    %439 = vmatpush2.bf16.msra.mxu0 0
    %440 = vmatprep.subr.bf16.mxu0 0
    %441 = vmatpush2.bf16.msra.mxu0 0
    %442 = vmatprep.mubr.bf16.mxu0 0
    %443 = vmatmul.mubr.bf16.gmra.mxu0 %v89
    %v444 = vpop.f32.mrf.mxu0
    %v445 = vadd.f32 %v143, %v444
    %v446 = vpop.f32.mrf.mxu0
    %v447 = vadd.f32 %v147, %v446
    %v448 = vpop.f32.mrf.mxu0
    %v449 = vpop.f32.mrf.mxu0
    %450 = vdwg.mxu0
    %451 = vmatprep.subr.bf16.mxu0 %v359
    %452 = vmatpush1.bf16.msra.mxu0 %v358
    %453 = vmatprep.subr.bf16.mxu0 %v353
    %454 = vmatpush1.bf16.msra.mxu0 %v352
    %455 = vmatprep.subr.bf16.mxu0 %v347
    %456 = vmatpush1.bf16.msra.mxu0 %v346
    %457 = vmatprep.subr.bf16.mxu0 %v341
    %458 = vmatpush1.bf16.msra.mxu0 %v340
    %459 = vmatprep.subr.bf16.mxu0 %v335
    %460 = vmatpush1.bf16.msra.mxu0 %v334
    %461 = vmatprep.subr.bf16.mxu0 %v329
    %462 = vmatpush1.bf16.msra.mxu0 %v328
    %463 = vmatprep.subr.bf16.mxu0 %v323
    %464 = vmatpush1.bf16.msra.mxu0 %v322
    %465 = vmatprep.subr.bf16.mxu0 %v317
    %466 = vmatpush1.bf16.msra.mxu0 %v316
    %467 = vmatprep.subr.bf16.mxu0 0
    %468 = vmatpush2.bf16.msra.mxu0 0
    %469 = vmatprep.subr.bf16.mxu0 0
    %470 = vmatpush2.bf16.msra.mxu0 0
    %471 = vmatprep.subr.bf16.mxu0 0
    %472 = vmatpush2.bf16.msra.mxu0 0
    %473 = vmatprep.subr.bf16.mxu0 0
    %474 = vmatpush2.bf16.msra.mxu0 0
    %475 = vmatprep.subr.bf16.mxu0 0
    %476 = vmatpush2.bf16.msra.mxu0 0
    %477 = vmatprep.subr.bf16.mxu0 0
    %478 = vmatpush2.bf16.msra.mxu0 0
    %479 = vmatprep.subr.bf16.mxu0 0
    %480 = vmatpush2.bf16.msra.mxu0 0
    %481 = vmatprep.subr.bf16.mxu0 0
    %482 = vmatpush2.bf16.msra.mxu0 0
    %483 = vmatprep.mubr.bf16.mxu0 0
    %484 = vmatmul.mubr.bf16.gmra.mxu0 %v89
    %v485 = vpop.f32.mrf.mxu0
    %v486 = vadd.f32 %v151, %v485
    %v487 = vpop.f32.mrf.mxu0
    %v488 = vadd.f32 %v155, %v487
    %v489 = vpop.f32.mrf.mxu0
    %v490 = vpop.f32.mrf.mxu0
    %491 = vdwg.mxu0
    %492 = vmatprep.subr.bf16.mxu0 %v361
    %493 = vmatpush1.bf16.msra.mxu0 %v360
    %494 = vmatprep.subr.bf16.mxu0 %v355
    %495 = vmatpush1.bf16.msra.mxu0 %v354
    %496 = vmatprep.subr.bf16.mxu0 %v349
    %497 = vmatpush1.bf16.msra.mxu0 %v348
    %498 = vmatprep.subr.bf16.mxu0 %v343
    %499 = vmatpush1.bf16.msra.mxu0 %v342
    %500 = vmatprep.subr.bf16.mxu0 %v337
    %501 = vmatpush1.bf16.msra.mxu0 %v336
    %502 = vmatprep.subr.bf16.mxu0 %v331
    %503 = vmatpush1.bf16.msra.mxu0 %v330
    %504 = vmatprep.subr.bf16.mxu0 %v325
    %505 = vmatpush1.bf16.msra.mxu0 %v324
    %506 = vmatprep.subr.bf16.mxu0 %v319
    %507 = vmatpush1.bf16.msra.mxu0 %v318
    %508 = vmatprep.subr.bf16.mxu0 0
    %509 = vmatpush2.bf16.msra.mxu0 0
    %510 = vmatprep.subr.bf16.mxu0 0
    %511 = vmatpush2.bf16.msra.mxu0 0
    %512 = vmatprep.subr.bf16.mxu0 0
    %513 = vmatpush2.bf16.msra.mxu0 0
    %514 = vmatprep.subr.bf16.mxu0 0
    %515 = vmatpush2.bf16.msra.mxu0 0
    %516 = vmatprep.subr.bf16.mxu0 0
    %517 = vmatpush2.bf16.msra.mxu0 0
    %518 = vmatprep.subr.bf16.mxu0 0
    %519 = vmatpush2.bf16.msra.mxu0 0
    %520 = vmatprep.subr.bf16.mxu0 0
    %521 = vmatpush2.bf16.msra.mxu0 0
    %522 = vmatprep.subr.bf16.mxu0 0
    %523 = vmatpush2.bf16.msra.mxu0 0
    %524 = vmatprep.mubr.bf16.mxu0 0
    %525 = vmatmul.mubr.bf16.gmra.mxu0 %v89
    %v526 = vpop.f32.mrf.mxu0
    %v527 = vadd.f32 %v159, %v526
    %v528 = vpop.f32.mrf.mxu0
    %v529 = vadd.f32 %v163, %v528
    %v530 = vpop.f32.mrf.mxu0
    %v531 = vpop.f32.mrf.mxu0
    %532 = vdwg.mxu0
    %v533 = vpack.c.bf16 %v445, %v445
    %v534 = vpack.c.bf16 %v486, %v486
    %v535 = vpack.c.bf16 %v527, %v527
    %536 = vmatprep.subr.bf16.mxu0 0
    %537 = vmatpush1.bf16.xpose.msra.mxu0 0
    %538 = vmatprep.subr.bf16.mxu0 0
    %539 = vmatpush1.bf16.xpose.msra.mxu0 0
    %540 = vmatprep.subr.bf16.mxu0 0
    %541 = vmatpush1.bf16.xpose.msra.mxu0 0
    %542 = vmatprep.subr.bf16.mxu0 0
    %543 = vmatpush1.bf16.xpose.msra.mxu0 0
    %544 = vmatprep.subr.bf16.mxu0 0
    %545 = vmatpush1.bf16.xpose.msra.mxu0 0
    %546 = vmatprep.subr.bf16.mxu0 0
    %547 = vmatpush1.bf16.xpose.msra.mxu0 0
    %548 = vmatprep.subr.bf16.mxu0 0
    %549 = vmatpush1.bf16.xpose.msra.mxu0 0
    %550 = vmatprep.subr.bf16.mxu0 0
    %551 = vmatpush1.bf16.xpose.msra.mxu0 %v534
    %552 = vmatprep.subr.bf16.mxu0 0
    %553 = vmatpush2.bf16.xpose.msra.mxu0 0
    %554 = vmatprep.subr.bf16.mxu0 0
    %555 = vmatpush2.bf16.xpose.msra.mxu0 0
    %556 = vmatprep.subr.bf16.mxu0 0
    %557 = vmatpush2.bf16.xpose.msra.mxu0 0
    %558 = vmatprep.subr.bf16.mxu0 0
    %559 = vmatpush2.bf16.xpose.msra.mxu0 0
    %560 = vmatprep.subr.bf16.mxu0 0
    %561 = vmatpush2.bf16.xpose.msra.mxu0 0
    %562 = vmatprep.subr.bf16.mxu0 0
    %563 = vmatpush2.bf16.xpose.msra.mxu0 0
    %564 = vmatprep.subr.bf16.mxu0 0
    %565 = vmatpush2.bf16.xpose.msra.mxu0 0
    %566 = vmatprep.subr.bf16.mxu0 0
    %567 = vmatpush2.bf16.xpose.msra.mxu0 0
    %568 = vmatprep.mubr.bf16.mxu0 0
    %569 = vmatmul.mubr.bf16.gmra.mxu0 %v533
    %v570 = vpop.f32.mrf.mxu0
    %v571 = vadd.f32 0.0, %v570
    %v572 = vpop.f32.mrf.mxu0
    %v573 = vpop.f32.mrf.mxu0
    %v574 = vpop.f32.mrf.mxu0
    %575 = vdwg.mxu0
    %vm576 = vcmask 64512
    %v577 = vsel %vm576, %v571, -inf
    %578 = vmax.xlane.f32.xlu0 %v577
    %v579 = vpop.xlane.xlu0 %578
    %v580 = vsub.f32 %v571, %v579
    %v581 = vmul.f32 %v580, 1.442695
    %v582 = vpow.pop %v581
    %v583 = vsel %vm576, %v582, 0.0
    %584 = vadd.xlane.f32.xlu0 %v583
    %v585 = vpop.xlane.xlu0 %584
    %v586 = vrcp.pop %v585
    %v587 = vmul.f32 %v582, %v586
    %v588 = vpack.c.bf16 %v587, %v587
    %v590 = vsel %vm576, %v588, 0
    %vm592 = vcmask 1043456
    %v594 = vsel %vm592, %v535, 0
    %596 = vmatprep.subr.bf16.mxu0 0
    %597 = vmatpush1.bf16.msra.mxu0 0
    %598 = vmatprep.subr.bf16.mxu0 0
    %599 = vmatpush1.bf16.msra.mxu0 0
    %600 = vmatprep.subr.bf16.mxu0 0
    %601 = vmatpush1.bf16.msra.mxu0 0
    %602 = vmatprep.subr.bf16.mxu0 0
    %603 = vmatpush1.bf16.msra.mxu0 0
    %604 = vmatprep.subr.bf16.mxu0 0
    %605 = vmatpush1.bf16.msra.mxu0 0
    %606 = vmatprep.subr.bf16.mxu0 0
    %607 = vmatpush1.bf16.msra.mxu0 0
    %608 = vmatprep.subr.bf16.mxu0 0
    %609 = vmatpush1.bf16.msra.mxu0 0
    %610 = vmatprep.subr.bf16.mxu0 0
    %611 = vmatpush1.bf16.msra.mxu0 %v594
    %612 = vmatprep.subr.bf16.mxu0 0
    %613 = vmatpush2.bf16.msra.mxu0 0
    %614 = vmatprep.subr.bf16.mxu0 0
    %615 = vmatpush2.bf16.msra.mxu0 0
    %616 = vmatprep.subr.bf16.mxu0 0
    %617 = vmatpush2.bf16.msra.mxu0 0
    %618 = vmatprep.subr.bf16.mxu0 0
    %619 = vmatpush2.bf16.msra.mxu0 0
    %620 = vmatprep.subr.bf16.mxu0 0
    %621 = vmatpush2.bf16.msra.mxu0 0
    %622 = vmatprep.subr.bf16.mxu0 0
    %623 = vmatpush2.bf16.msra.mxu0 0
    %624 = vmatprep.subr.bf16.mxu0 0
    %625 = vmatpush2.bf16.msra.mxu0 0
    %626 = vmatprep.subr.bf16.mxu0 0
    %627 = vmatpush2.bf16.msra.mxu0 0
    %628 = vmatprep.mubr.bf16.mxu0 0
    %629 = vmatmul.mubr.bf16.gmra.mxu0 %v590
    %v630 = vpop.f32.mrf.mxu0
    %v631 = vadd.f32 0.0, %v630
    %v632 = vpop.f32.mrf.mxu0
    %v633 = vpop.f32.mrf.mxu0
    %v634 = vpop.f32.mrf.mxu0
    %635 = vdwg.mxu0
    %v636 = vpack.c.bf16 %v447, %v447
    %v637 = vpack.c.bf16 %v488, %v488
    %v638 = vpack.c.bf16 %v529, %v529
    %639 = vmatprep.subr.bf16.mxu0 0
    %640 = vmatpush1.bf16.xpose.msra.mxu0 0
    %641 = vmatprep.subr.bf16.mxu0 0
    %642 = vmatpush1.bf16.xpose.msra.mxu0 0
    %643 = vmatprep.subr.bf16.mxu0 0
    %644 = vmatpush1.bf16.xpose.msra.mxu0 0
    %645 = vmatprep.subr.bf16.mxu0 0
    %646 = vmatpush1.bf16.xpose.msra.mxu0 0
    %647 = vmatprep.subr.bf16.mxu0 0
    %648 = vmatpush1.bf16.xpose.msra.mxu0 0
    %649 = vmatprep.subr.bf16.mxu0 0
    %650 = vmatpush1.bf16.xpose.msra.mxu0 0
    %651 = vmatprep.subr.bf16.mxu0 0
    %652 = vmatpush1.bf16.xpose.msra.mxu0 0
    %653 = vmatprep.subr.bf16.mxu0 0
    %654 = vmatpush1.bf16.xpose.msra.mxu0 %v637
    %655 = vmatprep.subr.bf16.mxu0 0
    %656 = vmatpush2.bf16.xpose.msra.mxu0 0
    %657 = vmatprep.subr.bf16.mxu0 0
    %658 = vmatpush2.bf16.xpose.msra.mxu0 0
    %659 = vmatprep.subr.bf16.mxu0 0
    %660 = vmatpush2.bf16.xpose.msra.mxu0 0
    %661 = vmatprep.subr.bf16.mxu0 0
    %662 = vmatpush2.bf16.xpose.msra.mxu0 0
    %663 = vmatprep.subr.bf16.mxu0 0
    %664 = vmatpush2.bf16.xpose.msra.mxu0 0
    %665 = vmatprep.subr.bf16.mxu0 0
    %666 = vmatpush2.bf16.xpose.msra.mxu0 0
    %667 = vmatprep.subr.bf16.mxu0 0
    %668 = vmatpush2.bf16.xpose.msra.mxu0 0
    %669 = vmatprep.subr.bf16.mxu0 0
    %670 = vmatpush2.bf16.xpose.msra.mxu0 0
    %671 = vmatprep.mubr.bf16.mxu0 0
    %672 = vmatmul.mubr.bf16.gmra.mxu0 %v636
    %v673 = vpop.f32.mrf.mxu0
    %v674 = vadd.f32 0.0, %v673
    %v675 = vpop.f32.mrf.mxu0
    %v676 = vpop.f32.mrf.mxu0
    %v677 = vpop.f32.mrf.mxu0
    %678 = vdwg.mxu0
    %v679 = vsel %vm576, %v674, -inf
    %680 = vmax.xlane.f32.xlu0 %v679
    %v681 = vpop.xlane.xlu0 %680
    %v682 = vsub.f32 %v674, %v681
    %v683 = vmul.f32 %v682, 1.442695
    %v684 = vpow.pop %v683
    %v685 = vsel %vm576, %v684, 0.0
    %686 = vadd.xlane.f32.xlu0 %v685
    %v687 = vpop.xlane.xlu0 %686
    %v688 = vrcp.pop %v687
    %v689 = vmul.f32 %v684, %v688
    %v690 = vpack.c.bf16 %v689, %v689
    %v692 = vsel %vm576, %v690, 0
    %v695 = vsel %vm592, %v638, 0
    %697 = vmatprep.subr.bf16.mxu0 0
    %698 = vmatpush1.bf16.msra.mxu0 0
    %699 = vmatprep.subr.bf16.mxu0 0
    %700 = vmatpush1.bf16.msra.mxu0 0
    %701 = vmatprep.subr.bf16.mxu0 0
    %702 = vmatpush1.bf16.msra.mxu0 0
    %703 = vmatprep.subr.bf16.mxu0 0
    %704 = vmatpush1.bf16.msra.mxu0 0
    %705 = vmatprep.subr.bf16.mxu0 0
    %706 = vmatpush1.bf16.msra.mxu0 0
    %707 = vmatprep.subr.bf16.mxu0 0
    %708 = vmatpush1.bf16.msra.mxu0 0
    %709 = vmatprep.subr.bf16.mxu0 0
    %710 = vmatpush1.bf16.msra.mxu0 0
    %711 = vmatprep.subr.bf16.mxu0 0
    %712 = vmatpush1.bf16.msra.mxu0 %v695
    %713 = vmatprep.subr.bf16.mxu0 0
    %714 = vmatpush2.bf16.msra.mxu0 0
    %715 = vmatprep.subr.bf16.mxu0 0
    %716 = vmatpush2.bf16.msra.mxu0 0
    %717 = vmatprep.subr.bf16.mxu0 0
    %718 = vmatpush2.bf16.msra.mxu0 0
    %719 = vmatprep.subr.bf16.mxu0 0
    %720 = vmatpush2.bf16.msra.mxu0 0
    %721 = vmatprep.subr.bf16.mxu0 0
    %722 = vmatpush2.bf16.msra.mxu0 0
    %723 = vmatprep.subr.bf16.mxu0 0
    %724 = vmatpush2.bf16.msra.mxu0 0
    %725 = vmatprep.subr.bf16.mxu0 0
    %726 = vmatpush2.bf16.msra.mxu0 0
    %727 = vmatprep.subr.bf16.mxu0 0
    %728 = vmatpush2.bf16.msra.mxu0 0
    %729 = vmatprep.mubr.bf16.mxu0 0
    %730 = vmatmul.mubr.bf16.gmra.mxu0 %v692
    %v731 = vpop.f32.mrf.mxu0
    %v732 = vadd.f32 0.0, %v731
    %v733 = vpop.f32.mrf.mxu0
    %v734 = vpop.f32.mrf.mxu0
    %v735 = vpop.f32.mrf.mxu0
    %736 = vdwg.mxu0
    %v737 = vld [vmem:[%s4] sm:$0x7]
    %v738 = vpack.c.bf16 %v631, %v631
    %v739 = vpack.c.bf16 %v732, %v732
    %v740 = vld [vmem:[#allocation4] sm:$0xf]
    %v741 = vld [vmem:[#allocation4 + $0x4] sm:$0xf]
    %v742 = vld [vmem:[#allocation4 + $0x8] sm:$0xf]
    %v743 = vld [vmem:[#allocation4 + $0xc] sm:$0xf]
    %v744 = vld [vmem:[#allocation4 + $0x10] sm:$0xf]
    %v745 = vld [vmem:[#allocation4 + $0x14] sm:$0xf]
    %v746 = vld [vmem:[#allocation4 + $0x18] sm:$0xf]
    %v747 = vld [vmem:[#allocation4 + $0x1c] sm:$0xf]
    %v748 = vld [vmem:[#allocation4 + $0x20] sm:$0xf]
    %v749 = vld [vmem:[#allocation4 + $0x24] sm:$0xf]
    %v750 = vld [vmem:[#allocation4 + $0x28] sm:$0xf]
    %v751 = vld [vmem:[#allocation4 + $0x2c] sm:$0xf]
    %v752 = vld [vmem:[#allocation4 + $0x30] sm:$0xf]
    %v753 = vld [vmem:[#allocation4 + $0x34] sm:$0xf]
    %v754 = vld [vmem:[#allocation4 + $0x38] sm:$0xf]
    %v755 = vld [vmem:[#allocation4 + $0x3c] sm:$0xf]
    %v756 = vld [vmem:[#allocation4 + $0x40] sm:$0xf]
    %v757 = vld [vmem:[#allocation4 + $0x44] sm:$0xf]
    %v758 = vld [vmem:[#allocation4 + $0x48] sm:$0xf]
    %v759 = vld [vmem:[#allocation4 + $0x4c] sm:$0xf]
    %v760 = vld [vmem:[#allocation4 + $0x50] sm:$0xf]
    %v761 = vld [vmem:[#allocation4 + $0x54] sm:$0xf]
    %v762 = vld [vmem:[#allocation4 + $0x58] sm:$0xf]
    %v763 = vld [vmem:[#allocation4 + $0x5c] sm:$0xf]
    %v764 = vld [vmem:[#allocation4 + $0x60] sm:$0xf]
    %v765 = vld [vmem:[#allocation4 + $0x64] sm:$0xf]
    %v766 = vld [vmem:[#allocation4 + $0x68] sm:$0xf]
    %v767 = vld [vmem:[#allocation4 + $0x6c] sm:$0xf]
    %v768 = vld [vmem:[#allocation4 + $0x70] sm:$0xf]
    %v769 = vld [vmem:[#allocation4 + $0x74] sm:$0xf]
    %v770 = vld [vmem:[#allocation4 + $0x78] sm:$0xf]
    %v771 = vld [vmem:[#allocation4 + $0x7c] sm:$0xf]
    %v772 = vlaneseq
    %v773 = vshrl.u32 %v772, 7
    %v774 = vsub.s32 0, %v773
    %v775 = vrot.slane %v737, %v774
    %v808 = vunpack.c.l.b16 %v740
    %v809 = vunpack.c.l.b16 %v741
    %v810 = vunpack.c.l.b16 %v742
    %v811 = vunpack.c.l.b16 %v743
    %v812 = vunpack.c.l.b16 %v744
    %v813 = vunpack.c.l.b16 %v745
    %v814 = vunpack.c.l.b16 %v746
    %v815 = vunpack.c.l.b16 %v747
    %v816 = vunpack.c.l.b16 %v748
    %v817 = vunpack.c.l.b16 %v749
    %v818 = vunpack.c.l.b16 %v750
    %v819 = vunpack.c.l.b16 %v751
    %v820 = vunpack.c.l.b16 %v752
    %v821 = vunpack.c.l.b16 %v753
    %v822 = vunpack.c.l.b16 %v754
    %v823 = vunpack.c.l.b16 %v755
    %v824 = vunpack.c.l.b16 %v756
    %v825 = vunpack.c.l.b16 %v757
    %v826 = vunpack.c.l.b16 %v758
    %v827 = vunpack.c.l.b16 %v759
    %v828 = vunpack.c.l.b16 %v760
    %v829 = vunpack.c.l.b16 %v761
    %v830 = vunpack.c.l.b16 %v762
    %v831 = vunpack.c.l.b16 %v763
    %v832 = vunpack.c.l.b16 %v764
    %v833 = vunpack.c.l.b16 %v765
    %v834 = vunpack.c.l.b16 %v766
    %v835 = vunpack.c.l.b16 %v767
    %v836 = vunpack.c.l.b16 %v768
    %v837 = vunpack.c.l.b16 %v769
    %v838 = vunpack.c.l.b16 %v770
    %v839 = vunpack.c.l.b16 %v771
    %v840 = vpack.c.b16 %v809, %v808
    %v841 = vpack.c.b16 %v811, %v810
    %v842 = vpack.c.b16 %v813, %v812
    %v843 = vpack.c.b16 %v815, %v814
    %v844 = vpack.c.b16 %v817, %v816
    %v845 = vpack.c.b16 %v819, %v818
    %v846 = vpack.c.b16 %v821, %v820
    %v847 = vpack.c.b16 %v823, %v822
    %v848 = vpack.c.b16 %v825, %v824
    %v849 = vpack.c.b16 %v827, %v826
    %v850 = vpack.c.b16 %v829, %v828
    %v851 = vpack.c.b16 %v831, %v830
    %v852 = vpack.c.b16 %v833, %v832
    %v853 = vpack.c.b16 %v835, %v834
    %v854 = vpack.c.b16 %v837, %v836
    %v855 = vpack.c.b16 %v839, %v838
    %872 = vmatprep.subr.bf16.mxu0 0
    %873 = vmatpush1.bf16.msra.mxu0 %v847
    %874 = vmatprep.subr.bf16.mxu0 0
    %875 = vmatpush1.bf16.msra.mxu0 %v846
    %876 = vmatprep.subr.bf16.mxu0 0
    %877 = vmatpush1.bf16.msra.mxu0 %v845
    %878 = vmatprep.subr.bf16.mxu0 0
    %879 = vmatpush1.bf16.msra.mxu0 %v844
    %880 = vmatprep.subr.bf16.mxu0 0
    %881 = vmatpush1.bf16.msra.mxu0 %v843
    %882 = vmatprep.subr.bf16.mxu0 0
    %883 = vmatpush1.bf16.msra.mxu0 %v842
    %884 = vmatprep.subr.bf16.mxu0 0
    %885 = vmatpush1.bf16.msra.mxu0 %v841
    %886 = vmatprep.subr.bf16.mxu0 0
    %887 = vmatpush1.bf16.msra.mxu0 %v840
    %888 = vmatprep.subr.bf16.mxu0 0
    %889 = vmatpush2.bf16.msra.mxu0 %v855
    %890 = vmatprep.subr.bf16.mxu0 0
    %891 = vmatpush2.bf16.msra.mxu0 %v854
    %892 = vmatprep.subr.bf16.mxu0 0
    %893 = vmatpush2.bf16.msra.mxu0 %v853
    %894 = vmatprep.subr.bf16.mxu0 0
    %895 = vmatpush2.bf16.msra.mxu0 %v852
    %896 = vmatprep.subr.bf16.mxu0 0
    %897 = vmatpush2.bf16.msra.mxu0 %v851
    %898 = vmatprep.subr.bf16.mxu0 0
    %899 = vmatpush2.bf16.msra.mxu0 %v850
    %900 = vmatprep.subr.bf16.mxu0 0
    %901 = vmatpush2.bf16.msra.mxu0 %v849
    %902 = vmatprep.subr.bf16.mxu0 0
    %903 = vmatpush2.bf16.msra.mxu0 %v848
    %904 = vmatprep.mubr.bf16.mxu0 %v739
    %905 = vmatmul.mubr.bf16.gmra.mxu0 %v738
    %v906 = vpop.f32.mrf.mxu0
    %v907 = vadd.f32 %v775, %v906
    %v908 = vpop.f32.mrf.mxu0
    %v909 = vpop.f32.mrf.mxu0
    %v910 = vpop.f32.mrf.mxu0
    %911 = vdwg.mxu0
    %v912 = vadd.f32 %v88, %v907
    %913 = vadd.xlane.f32.xlu0 %v912
    %v914 = vpop.xlane.xlu0 %913
    %v915 = vrcp.pop 128.0
    %v916 = vmul.f32 %v914, %v915
    %v917 = vsub.f32 %v912, %v916
    %v918 = vmul.f32 %v917, %v917
    %919 = vadd.xlane.f32.xlu0 %v918
    %v920 = vpop.xlane.xlu0 %919
    %v921 = vmul.f32 %v920, %v915
    %v922 = vadd.f32 %v921, 1e-05
    %v923 = vrsqrt.pop %v922
    %v924 = vmul.f32 %v917, %v923
    %v925 = vlaneseq
    %v926 = vshrl.u32 %v925, 7
    %v927 = vsub.s32 1, %v926
    %v928 = vrot.slane %v737, %v927
    %v929 = vmul.f32 %v924, %v928
    %v930 = vlaneseq
    %v931 = vshrl.u32 %v930, 7
    %v932 = vsub.s32 2, %v931
    %v933 = vrot.slane %v737, %v932
    %v934 = vadd.f32 %v929, %v933
    %v935 = vpack.c.bf16 %v934, %v934
    %v936 = vld [vmem:[#allocation6] sm:$0xff]
    %v937 = vld [vmem:[#allocation6 + $0x8] sm:$0xff]
    %v938 = vld [vmem:[#allocation6 + $0x10] sm:$0xff]
    %v939 = vld [vmem:[#allocation6 + $0x18] sm:$0xff]
    %v940 = vld [vmem:[#allocation6 + $0x20] sm:$0xff]
    %v941 = vld [vmem:[#allocation6 + $0x28] sm:$0xff]
    %v942 = vld [vmem:[#allocation6 + $0x30] sm:$0xff]
    %v943 = vld [vmem:[#allocation6 + $0x38] sm:$0xff]
    %v944 = vld [vmem:[#allocation6 + $0x40] sm:$0xff]
    %v945 = vld [vmem:[#allocation6 + $0x48] sm:$0xff]
    %v946 = vld [vmem:[#allocation6 + $0x50] sm:$0xff]
    %v947 = vld [vmem:[#allocation6 + $0x58] sm:$0xff]
    %v948 = vld [vmem:[#allocation6 + $0x60] sm:$0xff]
    %v949 = vld [vmem:[#allocation6 + $0x68] sm:$0xff]
    %v950 = vld [vmem:[#allocation6 + $0x70] sm:$0xff]
    %v951 = vld [vmem:[#allocation6 + $0x78] sm:$0xff]
    %v952 = vld [vmem:[#allocation6 + $0x80] sm:$0xff]
    %v953 = vld [vmem:[#allocation6 + $0x88] sm:$0xff]
    %v954 = vld [vmem:[#allocation6 + $0x90] sm:$0xff]
    %v955 = vld [vmem:[#allocation6 + $0x98] sm:$0xff]
    %v956 = vld [vmem:[#allocation6 + $0xa0] sm:$0xff]
    %v957 = vld [vmem:[#allocation6 + $0xa8] sm:$0xff]
    %v958 = vld [vmem:[#allocation6 + $0xb0] sm:$0xff]
    %v959 = vld [vmem:[#allocation6 + $0xb8] sm:$0xff]
    %v960 = vld [vmem:[#allocation6 + $0xc0] sm:$0xff]
    %v961 = vld [vmem:[#allocation6 + $0xc8] sm:$0xff]
    %v962 = vld [vmem:[#allocation6 + $0xd0] sm:$0xff]
    %v963 = vld [vmem:[#allocation6 + $0xd8] sm:$0xff]
    %v964 = vld [vmem:[#allocation6 + $0xe0] sm:$0xff]
    %v965 = vld [vmem:[#allocation6 + $0xe8] sm:$0xff]
    %v966 = vld [vmem:[#allocation6 + $0xf0] sm:$0xff]
    %v967 = vld [vmem:[#allocation6 + $0xf8] sm:$0xff]
    %v968 = vld [vmem:[%s6] sm:$0xf]
    %v970 = vlaneseq
    %v971 = vshrl.u32 %v970, 7
    %v972 = vsub.s32 0, %v971
    %v973 = vrot.slane %v968, %v972
    %v974 = vlaneseq
    %v975 = vshrl.u32 %v974, 7
    %v976 = vsub.s32 1, %v975
    %v977 = vrot.slane %v968, %v976
    %v978 = vlaneseq
    %v979 = vshrl.u32 %v978, 7
    %v980 = vsub.s32 2, %v979
    %v981 = vrot.slane %v968, %v980
    %v982 = vlaneseq
    %v983 = vshrl.u32 %v982, 7
    %v984 = vsub.s32 3, %v983
    %v985 = vrot.slane %v968, %v984
    %v1022 = vunpack.c.l.b16 %v936
    %v1023 = vunpack.c.h.b16 %v936
    %v1024 = vunpack.c.l.b16 %v937
    %v1025 = vunpack.c.h.b16 %v937
    %v1026 = vunpack.c.l.b16 %v938
    %v1027 = vunpack.c.h.b16 %v938
    %v1028 = vunpack.c.l.b16 %v939
    %v1029 = vunpack.c.h.b16 %v939
    %v1030 = vunpack.c.l.b16 %v940
    %v1031 = vunpack.c.h.b16 %v940
    %v1032 = vunpack.c.l.b16 %v941
    %v1033 = vunpack.c.h.b16 %v941
    %v1034 = vunpack.c.l.b16 %v942
    %v1035 = vunpack.c.h.b16 %v942
    %v1036 = vunpack.c.l.b16 %v943
    %v1037 = vunpack.c.h.b16 %v943
    %v1038 = vunpack.c.l.b16 %v944
    %v1039 = vunpack.c.h.b16 %v944
    %v1040 = vunpack.c.l.b16 %v945
    %v1041 = vunpack.c.h.b16 %v945
    %v1042 = vunpack.c.l.b16 %v946
    %v1043 = vunpack.c.h.b16 %v946
    %v1044 = vunpack.c.l.b16 %v947
    %v1045 = vunpack.c.h.b16 %v947
    %v1046 = vunpack.c.l.b16 %v948
    %v1047 = vunpack.c.h.b16 %v948
    %v1048 = vunpack.c.l.b16 %v949
    %v1049 = vunpack.c.h.b16 %v949
    %v1050 = vunpack.c.l.b16 %v950
    %v1051 = vunpack.c.h.b16 %v950
    %v1052 = vunpack.c.l.b16 %v951
    %v1053 = vunpack.c.h.b16 %v951
    %v1054 = vunpack.c.l.b16 %v952
    %v1055 = vunpack.c.h.b16 %v952
    %v1056 = vunpack.c.l.b16 %v953
    %v1057 = vunpack.c.h.b16 %v953
    %v1058 = vunpack.c.l.b16 %v954
    %v1059 = vunpack.c.h.b16 %v954
    %v1060 = vunpack.c.l.b16 %v955
    %v1061 = vunpack.c.h.b16 %v955
    %v1062 = vunpack.c.l.b16 %v956
    %v1063 = vunpack.c.h.b16 %v956
    %v1064 = vunpack.c.l.b16 %v957
    %v1065 = vunpack.c.h.b16 %v957
    %v1066 = vunpack.c.l.b16 %v958
    %v1067 = vunpack.c.h.b16 %v958
    %v1068 = vunpack.c.l.b16 %v959
    %v1069 = vunpack.c.h.b16 %v959
    %v1070 = vunpack.c.l.b16 %v960
    %v1071 = vunpack.c.h.b16 %v960
    %v1072 = vunpack.c.l.b16 %v961
    %v1073 = vunpack.c.h.b16 %v961
    %v1074 = vunpack.c.l.b16 %v962
    %v1075 = vunpack.c.h.b16 %v962
    %v1076 = vunpack.c.l.b16 %v963
    %v1077 = vunpack.c.h.b16 %v963
    %v1078 = vunpack.c.l.b16 %v964
    %v1079 = vunpack.c.h.b16 %v964
    %v1080 = vunpack.c.l.b16 %v965
    %v1081 = vunpack.c.h.b16 %v965
    %v1082 = vunpack.c.l.b16 %v966
    %v1083 = vunpack.c.h.b16 %v966
    %v1084 = vunpack.c.l.b16 %v967
    %v1085 = vunpack.c.h.b16 %v967
    %v1086 = vpack.c.b16 %v1026, %v1022
    %v1087 = vpack.c.b16 %v1027, %v1023
    %v1088 = vpack.c.b16 %v1028, %v1024
    %v1089 = vpack.c.b16 %v1029, %v1025
    %v1090 = vpack.c.b16 %v1034, %v1030
    %v1091 = vpack.c.b16 %v1035, %v1031
    %v1092 = vpack.c.b16 %v1036, %v1032
    %v1093 = vpack.c.b16 %v1037, %v1033
    %v1094 = vpack.c.b16 %v1042, %v1038
    %v1095 = vpack.c.b16 %v1043, %v1039
    %v1096 = vpack.c.b16 %v1044, %v1040
    %v1097 = vpack.c.b16 %v1045, %v1041
    %v1098 = vpack.c.b16 %v1050, %v1046
    %v1099 = vpack.c.b16 %v1051, %v1047
    %v1100 = vpack.c.b16 %v1052, %v1048
    %v1101 = vpack.c.b16 %v1053, %v1049
    %v1102 = vpack.c.b16 %v1058, %v1054
    %v1103 = vpack.c.b16 %v1059, %v1055
    %v1104 = vpack.c.b16 %v1060, %v1056
    %v1105 = vpack.c.b16 %v1061, %v1057
    %v1106 = vpack.c.b16 %v1066, %v1062
    %v1107 = vpack.c.b16 %v1067, %v1063
    %v1108 = vpack.c.b16 %v1068, %v1064
    %v1109 = vpack.c.b16 %v1069, %v1065
    %v1110 = vpack.c.b16 %v1074, %v1070
    %v1111 = vpack.c.b16 %v1075, %v1071
    %v1112 = vpack.c.b16 %v1076, %v1072
    %v1113 = vpack.c.b16 %v1077, %v1073
    %v1114 = vpack.c.b16 %v1082, %v1078
    %v1115 = vpack.c.b16 %v1083, %v1079
    %v1116 = vpack.c.b16 %v1084, %v1080
    %v1117 = vpack.c.b16 %v1085, %v1081
    %1150 = vmatprep.subr.bf16.mxu0 %v1115
    %1151 = vmatpush1.bf16.msra.mxu0 %v1114
    %1152 = vmatprep.subr.bf16.mxu0 %v1111
    %1153 = vmatpush1.bf16.msra.mxu0 %v1110
    %1154 = vmatprep.subr.bf16.mxu0 %v1107
    %1155 = vmatpush1.bf16.msra.mxu0 %v1106
    %1156 = vmatprep.subr.bf16.mxu0 %v1103
    %1157 = vmatpush1.bf16.msra.mxu0 %v1102
    %1158 = vmatprep.subr.bf16.mxu0 %v1099
    %1159 = vmatpush1.bf16.msra.mxu0 %v1098
    %1160 = vmatprep.subr.bf16.mxu0 %v1095
    %1161 = vmatpush1.bf16.msra.mxu0 %v1094
    %1162 = vmatprep.subr.bf16.mxu0 %v1091
    %1163 = vmatpush1.bf16.msra.mxu0 %v1090
    %1164 = vmatprep.subr.bf16.mxu0 %v1087
    %1165 = vmatpush1.bf16.msra.mxu0 %v1086
    %1166 = vmatprep.subr.bf16.mxu0 0
    %1167 = vmatpush2.bf16.msra.mxu0 0
    %1168 = vmatprep.subr.bf16.mxu0 0
    %1169 = vmatpush2.bf16.msra.mxu0 0
    %1170 = vmatprep.subr.bf16.mxu0 0
    %1171 = vmatpush2.bf16.msra.mxu0 0
    %1172 = vmatprep.subr.bf16.mxu0 0
    %1173 = vmatpush2.bf16.msra.mxu0 0
    %1174 = vmatprep.subr.bf16.mxu0 0
    %1175 = vmatpush2.bf16.msra.mxu0 0
    %1176 = vmatprep.subr.bf16.mxu0 0
    %1177 = vmatpush2.bf16.msra.mxu0 0
    %1178 = vmatprep.subr.bf16.mxu0 0
    %1179 = vmatpush2.bf16.msra.mxu0 0
    %1180 = vmatprep.subr.bf16.mxu0 0
    %1181 = vmatpush2.bf16.msra.mxu0 0
    %1182 = vmatprep.mubr.bf16.mxu0 0
    %1183 = vmatmul.mubr.bf16.gmra.mxu0 %v935
    %v1184 = vpop.f32.mrf.mxu0
    %v1185 = vadd.f32 %v973, %v1184
    %v1186 = vpop.f32.mrf.mxu0
    %v1187 = vadd.f32 %v977, %v1186
    %v1188 = vpop.f32.mrf.mxu0
    %v1189 = vpop.f32.mrf.mxu0
    %1190 = vdwg.mxu0
    %1191 = vmatprep.subr.bf16.mxu0 %v1117
    %1192 = vmatpush1.bf16.msra.mxu0 %v1116
    %1193 = vmatprep.subr.bf16.mxu0 %v1113
    %1194 = vmatpush1.bf16.msra.mxu0 %v1112
    %1195 = vmatprep.subr.bf16.mxu0 %v1109
    %1196 = vmatpush1.bf16.msra.mxu0 %v1108
    %1197 = vmatprep.subr.bf16.mxu0 %v1105
    %1198 = vmatpush1.bf16.msra.mxu0 %v1104
    %1199 = vmatprep.subr.bf16.mxu0 %v1101
    %1200 = vmatpush1.bf16.msra.mxu0 %v1100
    %1201 = vmatprep.subr.bf16.mxu0 %v1097
    %1202 = vmatpush1.bf16.msra.mxu0 %v1096
    %1203 = vmatprep.subr.bf16.mxu0 %v1093
    %1204 = vmatpush1.bf16.msra.mxu0 %v1092
    %1205 = vmatprep.subr.bf16.mxu0 %v1089
    %1206 = vmatpush1.bf16.msra.mxu0 %v1088
    %1207 = vmatprep.subr.bf16.mxu0 0
    %1208 = vmatpush2.bf16.msra.mxu0 0
    %1209 = vmatprep.subr.bf16.mxu0 0
    %1210 = vmatpush2.bf16.msra.mxu0 0
    %1211 = vmatprep.subr.bf16.mxu0 0
    %1212 = vmatpush2.bf16.msra.mxu0 0
    %1213 = vmatprep.subr.bf16.mxu0 0
    %1214 = vmatpush2.bf16.msra.mxu0 0
    %1215 = vmatprep.subr.bf16.mxu0 0
    %1216 = vmatpush2.bf16.msra.mxu0 0
    %1217 = vmatprep.subr.bf16.mxu0 0
    %1218 = vmatpush2.bf16.msra.mxu0 0
    %1219 = vmatprep.subr.bf16.mxu0 0
    %1220 = vmatpush2.bf16.msra.mxu0 0
    %1221 = vmatprep.subr.bf16.mxu0 0
    %1222 = vmatpush2.bf16.msra.mxu0 0
    %1223 = vmatprep.mubr.bf16.mxu0 0
    %1224 = vmatmul.mubr.bf16.gmra.mxu0 %v935
    %v1225 = vpop.f32.mrf.mxu0
    %v1226 = vadd.f32 %v981, %v1225
    %v1227 = vpop.f32.mrf.mxu0
    %v1228 = vadd.f32 %v985, %v1227
    %v1229 = vpop.f32.mrf.mxu0
    %v1230 = vpop.f32.mrf.mxu0
    %1231 = vdwg.mxu0
    %v1232 = vmax.f32 %v1185, 0.0
    %v1233 = vmax.f32 %v1187, 0.0
    %v1234 = vmax.f32 %v1226, 0.0
    %v1235 = vmax.f32 %v1228, 0.0
    %v1236 = vld [vmem:[%s8] sm:$0x7]
    %v1237 = vpack.c.bf16 %v1232, %v1232
    %v1238 = vpack.c.bf16 %v1233, %v1233
    %v1239 = vpack.c.bf16 %v1234, %v1234
    %v1240 = vpack.c.bf16 %v1235, %v1235
    %v1241 = vld [vmem:[#allocation7] sm:$0xf]
    %v1242 = vld [vmem:[#allocation7 + $0x4] sm:$0xf]
    %v1243 = vld [vmem:[#allocation7 + $0x8] sm:$0xf]
    %v1244 = vld [vmem:[#allocation7 + $0xc] sm:$0xf]
    %v1245 = vld [vmem:[#allocation7 + $0x10] sm:$0xf]
    %v1246 = vld [vmem:[#allocation7 + $0x14] sm:$0xf]
    %v1247 = vld [vmem:[#allocation7 + $0x18] sm:$0xf]
    %v1248 = vld [vmem:[#allocation7 + $0x1c] sm:$0xf]
    %v1249 = vld [vmem:[#allocation7 + $0x20] sm:$0xf]
    %v1250 = vld [vmem:[#allocation7 + $0x24] sm:$0xf]
    %v1251 = vld [vmem:[#allocation7 + $0x28] sm:$0xf]
    %v1252 = vld [vmem:[#allocation7 + $0x2c] sm:$0xf]
    %v1253 = vld [vmem:[#allocation7 + $0x30] sm:$0xf]
    %v1254 = vld [vmem:[#allocation7 + $0x34] sm:$0xf]
    %v1255 = vld [vmem:[#allocation7 + $0x38] sm:$0xf]
    %v1256 = vld [vmem:[#allocation7 + $0x3c] sm:$0xf]
    %v1257 = vld [vmem:[#allocation7 + $0x40] sm:$0xf]
    %v1258 = vld [vmem:[#allocation7 + $0x44] sm:$0xf]
    %v1259 = vld [vmem:[#allocation7 + $0x48] sm:$0xf]
    %v1260 = vld [vmem:[#allocation7 + $0x4c] sm:$0xf]
    %v1261 = vld [vmem:[#allocation7 + $0x50] sm:$0xf]
    %v1262 = vld [vmem:[#allocation7 + $0x54] sm:$0xf]
    %v1263 = vld [vmem:[#allocation7 + $0x58] sm:$0xf]
    %v1264 = vld [vmem:[#allocation7 + $0x5c] sm:$0xf]
    %v1265 = vld [vmem:[#allocation7 + $0x60] sm:$0xf]
    %v1266 = vld [vmem:[#allocation7 + $0x64] sm:$0xf]
    %v1267 = vld [vmem:[#allocation7 + $0x68] sm:$0xf]
    %v1268 = vld [vmem:[#allocation7 + $0x6c] sm:$0xf]
    %v1269 = vld [vmem:[#allocation7 + $0x70] sm:$0xf]
    %v1270 = vld [vmem:[#allocation7 + $0x74] sm:$0xf]
    %v1271 = vld [vmem:[#allocation7 + $0x78] sm:$0xf]
    %v1272 = vld [vmem:[#allocation7 + $0x7c] sm:$0xf]
    %v1273 = vld [vmem:[#allocation7 + $0x80] sm:$0xf]
    %v1274 = vld [vmem:[#allocation7 + $0x84] sm:$0xf]
    %v1275 = vld [vmem:[#allocation7 + $0x88] sm:$0xf]
    %v1276 = vld [vmem:[#allocation7 + $0x8c] sm:$0xf]
    %v1277 = vld [vmem:[#allocation7 + $0x90] sm:$0xf]
    %v1278 = vld [vmem:[#allocation7 + $0x94] sm:$0xf]
    %v1279 = vld [vmem:[#allocation7 + $0x98] sm:$0xf]
    %v1280 = vld [vmem:[#allocation7 + $0x9c] sm:$0xf]
    %v1281 = vld [vmem:[#allocation7 + $0xa0] sm:$0xf]
    %v1282 = vld [vmem:[#allocation7 + $0xa4] sm:$0xf]
    %v1283 = vld [vmem:[#allocation7 + $0xa8] sm:$0xf]
    %v1284 = vld [vmem:[#allocation7 + $0xac] sm:$0xf]
    %v1285 = vld [vmem:[#allocation7 + $0xb0] sm:$0xf]
    %v1286 = vld [vmem:[#allocation7 + $0xb4] sm:$0xf]
    %v1287 = vld [vmem:[#allocation7 + $0xb8] sm:$0xf]
    %v1288 = vld [vmem:[#allocation7 + $0xbc] sm:$0xf]
    %v1289 = vld [vmem:[#allocation7 + $0xc0] sm:$0xf]
    %v1290 = vld [vmem:[#allocation7 + $0xc4] sm:$0xf]
    %v1291 = vld [vmem:[#allocation7 + $0xc8] sm:$0xf]
    %v1292 = vld [vmem:[#allocation7 + $0xcc] sm:$0xf]
    %v1293 = vld [vmem:[#allocation7 + $0xd0] sm:$0xf]
    %v1294 = vld [vmem:[#allocation7 + $0xd4] sm:$0xf]
    %v1295 = vld [vmem:[#allocation7 + $0xd8] sm:$0xf]
    %v1296 = vld [vmem:[#allocation7 + $0xdc] sm:$0xf]
    %v1297 = vld [vmem:[#allocation7 + $0xe0] sm:$0xf]
    %v1298 = vld [vmem:[#allocation7 + $0xe4] sm:$0xf]
    %v1299 = vld [vmem:[#allocation7 + $0xe8] sm:$0xf]
    %v1300 = vld [vmem:[#allocation7 + $0xec] sm:$0xf]
    %v1301 = vld [vmem:[#allocation7 + $0xf0] sm:$0xf]
    %v1302 = vld [vmem:[#allocation7 + $0xf4] sm:$0xf]
    %v1303 = vld [vmem:[#allocation7 + $0xf8] sm:$0xf]
    %v1304 = vld [vmem:[#allocation7 + $0xfc] sm:$0xf]
    %v1305 = vlaneseq
    %v1306 = vshrl.u32 %v1305, 7
    %v1307 = vsub.s32 0, %v1306
    %v1308 = vrot.slane %v1236, %v1307
    %v1373 = vunpack.c.l.b16 %v1241
    %v1374 = vunpack.c.l.b16 %v1242
    %v1375 = vunpack.c.l.b16 %v1243
    %v1376 = vunpack.c.l.b16 %v1244
    %v1377 = vunpack.c.l.b16 %v1245
    %v1378 = vunpack.c.l.b16 %v1246
    %v1379 = vunpack.c.l.b16 %v1247
    %v1380 = vunpack.c.l.b16 %v1248
    %v1381 = vunpack.c.l.b16 %v1249
    %v1382 = vunpack.c.l.b16 %v1250
    %v1383 = vunpack.c.l.b16 %v1251
    %v1384 = vunpack.c.l.b16 %v1252
    %v1385 = vunpack.c.l.b16 %v1253
    %v1386 = vunpack.c.l.b16 %v1254
    %v1387 = vunpack.c.l.b16 %v1255
    %v1388 = vunpack.c.l.b16 %v1256
    %v1389 = vunpack.c.l.b16 %v1257
    %v1390 = vunpack.c.l.b16 %v1258
    %v1391 = vunpack.c.l.b16 %v1259
    %v1392 = vunpack.c.l.b16 %v1260
    %v1393 = vunpack.c.l.b16 %v1261
    %v1394 = vunpack.c.l.b16 %v1262
    %v1395 = vunpack.c.l.b16 %v1263
    %v1396 = vunpack.c.l.b16 %v1264
    %v1397 = vunpack.c.l.b16 %v1265
    %v1398 = vunpack.c.l.b16 %v1266
    %v1399 = vunpack.c.l.b16 %v1267
    %v1400 = vunpack.c.l.b16 %v1268
    %v1401 = vunpack.c.l.b16 %v1269
    %v1402 = vunpack.c.l.b16 %v1270
    %v1403 = vunpack.c.l.b16 %v1271
    %v1404 = vunpack.c.l.b16 %v1272
    %v1405 = vunpack.c.l.b16 %v1273
    %v1406 = vunpack.c.l.b16 %v1274
    %v1407 = vunpack.c.l.b16 %v1275
    %v1408 = vunpack.c.l.b16 %v1276
    %v1409 = vunpack.c.l.b16 %v1277
    %v1410 = vunpack.c.l.b16 %v1278
    %v1411 = vunpack.c.l.b16 %v1279
    %v1412 = vunpack.c.l.b16 %v1280
    %v1413 = vunpack.c.l.b16 %v1281
    %v1414 = vunpack.c.l.b16 %v1282
    %v1415 = vunpack.c.l.b16 %v1283
    %v1416 = vunpack.c.l.b16 %v1284
    %v1417 = vunpack.c.l.b16 %v1285
    %v1418 = vunpack.c.l.b16 %v1286
    %v1419 = vunpack.c.l.b16 %v1287
    %v1420 = vunpack.c.l.b16 %v1288
    %v1421 = vunpack.c.l.b16 %v1289
    %v1422 = vunpack.c.l.b16 %v1290
    %v1423 = vunpack.c.l.b16 %v1291
    %v1424 = vunpack.c.l.b16 %v1292
    %v1425 = vunpack.c.l.b16 %v1293
    %v1426 = vunpack.c.l.b16 %v1294
    %v1427 = vunpack.c.l.b16 %v1295
    %v1428 = vunpack.c.l.b16 %v1296
    %v1429 = vunpack.c.l.b16 %v1297
    %v1430 = vunpack.c.l.b16 %v1298
    %v1431 = vunpack.c.l.b16 %v1299
    %v1432 = vunpack.c.l.b16 %v1300
    %v1433 = vunpack.c.l.b16 %v1301
    %v1434 = vunpack.c.l.b16 %v1302
    %v1435 = vunpack.c.l.b16 %v1303
    %v1436 = vunpack.c.l.b16 %v1304
    %v1437 = vpack.c.b16 %v1374, %v1373
    %v1438 = vpack.c.b16 %v1376, %v1375
    %v1439 = vpack.c.b16 %v1378, %v1377
    %v1440 = vpack.c.b16 %v1380, %v1379
    %v1441 = vpack.c.b16 %v1382, %v1381
    %v1442 = vpack.c.b16 %v1384, %v1383
    %v1443 = vpack.c.b16 %v1386, %v1385
    %v1444 = vpack.c.b16 %v1388, %v1387
    %v1445 = vpack.c.b16 %v1390, %v1389
    %v1446 = vpack.c.b16 %v1392, %v1391
    %v1447 = vpack.c.b16 %v1394, %v1393
    %v1448 = vpack.c.b16 %v1396, %v1395
    %v1449 = vpack.c.b16 %v1398, %v1397
    %v1450 = vpack.c.b16 %v1400, %v1399
    %v1451 = vpack.c.b16 %v1402, %v1401
    %v1452 = vpack.c.b16 %v1404, %v1403
    %v1453 = vpack.c.b16 %v1406, %v1405
    %v1454 = vpack.c.b16 %v1408, %v1407
    %v1455 = vpack.c.b16 %v1410, %v1409
    %v1456 = vpack.c.b16 %v1412, %v1411
    %v1457 = vpack.c.b16 %v1414, %v1413
    %v1458 = vpack.c.b16 %v1416, %v1415
    %v1459 = vpack.c.b16 %v1418, %v1417
    %v1460 = vpack.c.b16 %v1420, %v1419
    %v1461 = vpack.c.b16 %v1422, %v1421
    %v1462 = vpack.c.b16 %v1424, %v1423
    %v1463 = vpack.c.b16 %v1426, %v1425
    %v1464 = vpack.c.b16 %v1428, %v1427
    %v1465 = vpack.c.b16 %v1430, %v1429
    %v1466 = vpack.c.b16 %v1432, %v1431
    %v1467 = vpack.c.b16 %v1434, %v1433
    %v1468 = vpack.c.b16 %v1436, %v1435
    %1501 = vmatprep.subr.bf16.mxu0 0
    %1502 = vmatpush1.bf16.msra.mxu0 %v1444
    %1503 = vmatprep.subr.bf16.mxu0 0
    %1504 = vmatpush1.bf16.msra.mxu0 %v1443
    %1505 = vmatprep.subr.bf16.mxu0 0
    %1506 = vmatpush1.bf16.msra.mxu0 %v1442
    %1507 = vmatprep.subr.bf16.mxu0 0
    %1508 = vmatpush1.bf16.msra.mxu0 %v1441
    %1509 = vmatprep.subr.bf16.mxu0 0
    %1510 = vmatpush1.bf16.msra.mxu0 %v1440
    %1511 = vmatprep.subr.bf16.mxu0 0
    %1512 = vmatpush1.bf16.msra.mxu0 %v1439
    %1513 = vmatprep.subr.bf16.mxu0 0
    %1514 = vmatpush1.bf16.msra.mxu0 %v1438
    %1515 = vmatprep.subr.bf16.mxu0 0
    %1516 = vmatpush1.bf16.msra.mxu0 %v1437
    %1517 = vmatprep.subr.bf16.mxu0 0
    %1518 = vmatpush2.bf16.msra.mxu0 %v1452
    %1519 = vmatprep.subr.bf16.mxu0 0
    %1520 = vmatpush2.bf16.msra.mxu0 %v1451
    %1521 = vmatprep.subr.bf16.mxu0 0
    %1522 = vmatpush2.bf16.msra.mxu0 %v1450
    %1523 = vmatprep.subr.bf16.mxu0 0
    %1524 = vmatpush2.bf16.msra.mxu0 %v1449
    %1525 = vmatprep.subr.bf16.mxu0 0
    %1526 = vmatpush2.bf16.msra.mxu0 %v1448
    %1527 = vmatprep.subr.bf16.mxu0 0
    %1528 = vmatpush2.bf16.msra.mxu0 %v1447
    %1529 = vmatprep.subr.bf16.mxu0 0
    %1530 = vmatpush2.bf16.msra.mxu0 %v1446
    %1531 = vmatprep.subr.bf16.mxu0 0
    %1532 = vmatpush2.bf16.msra.mxu0 %v1445
    %1533 = vmatprep.mubr.bf16.mxu0 %v1238
    %1534 = vmatmul.mubr.bf16.gmra.mxu0 %v1237
    %v1535 = vpop.f32.mrf.mxu0
    %v1536 = vadd.f32 %v1308, %v1535
    %v1537 = vpop.f32.mrf.mxu0
    %v1538 = vpop.f32.mrf.mxu0
    %v1539 = vpop.f32.mrf.mxu0
    %1540 = vdwg.mxu0
    %1541 = vmatprep.subr.bf16.mxu0 0
    %1542 = vmatpush1.bf16.msra.mxu0 %v1460
    %1543 = vmatprep.subr.bf16.mxu0 0
    %1544 = vmatpush1.bf16.msra.mxu0 %v1459
    %1545 = vmatprep.subr.bf16.mxu0 0
    %1546 = vmatpush1.bf16.msra.mxu0 %v1458
    %1547 = vmatprep.subr.bf16.mxu0 0
    %1548 = vmatpush1.bf16.msra.mxu0 %v1457
    %1549 = vmatprep.subr.bf16.mxu0 0
    %1550 = vmatpush1.bf16.msra.mxu0 %v1456
    %1551 = vmatprep.subr.bf16.mxu0 0
    %1552 = vmatpush1.bf16.msra.mxu0 %v1455
    %1553 = vmatprep.subr.bf16.mxu0 0
    %1554 = vmatpush1.bf16.msra.mxu0 %v1454
    %1555 = vmatprep.subr.bf16.mxu0 0
    %1556 = vmatpush1.bf16.msra.mxu0 %v1453
    %1557 = vmatprep.subr.bf16.mxu0 0
    %1558 = vmatpush2.bf16.msra.mxu0 %v1468
    %1559 = vmatprep.subr.bf16.mxu0 0
    %1560 = vmatpush2.bf16.msra.mxu0 %v1467
    %1561 = vmatprep.subr.bf16.mxu0 0
    %1562 = vmatpush2.bf16.msra.mxu0 %v1466
    %1563 = vmatprep.subr.bf16.mxu0 0
    %1564 = vmatpush2.bf16.msra.mxu0 %v1465
    %1565 = vmatprep.subr.bf16.mxu0 0
    %1566 = vmatpush2.bf16.msra.mxu0 %v1464
    %1567 = vmatprep.subr.bf16.mxu0 0
    %1568 = vmatpush2.bf16.msra.mxu0 %v1463
    %1569 = vmatprep.subr.bf16.mxu0 0
    %1570 = vmatpush2.bf16.msra.mxu0 %v1462
    %1571 = vmatprep.subr.bf16.mxu0 0
    %1572 = vmatpush2.bf16.msra.mxu0 %v1461
    %1573 = vmatprep.mubr.bf16.mxu0 %v1240
    %1574 = vmatmul.mubr.bf16.gmra.mxu0 %v1239
    %v1575 = vpop.f32.mrf.mxu0
    %v1576 = vadd.f32 %v1536, %v1575
    %v1577 = vpop.f32.mrf.mxu0
    %v1578 = vpop.f32.mrf.mxu0
    %v1579 = vpop.f32.mrf.mxu0
    %1580 = vdwg.mxu0
    %v1581 = vmax.f32 %v1576, 0.0
    %v1582 = vlaneseq
    %v1583 = vshrl.u32 %v1582, 7
    %v1584 = vsub.s32 1, %v1583
    %v1585 = vrot.slane %v1236, %v1584
    %v1586 = vmul.f32 %v1581, %v1585
    %1587 = vadd.xlane.f32.xlu0 %v1586
    %v1588 = vpop.xlane.xlu0 %1587
    %v1589 = vlaneseq
    %v1590 = vshrl.u32 %v1589, 7
    %v1591 = vsub.s32 2, %v1590
    %v1592 = vrot.slane %v1236, %v1591
    %v1593 = vadd.f32 %v1588, %v1592
    %vm1594 = vcmask 7168
    %1595 = vst.msk [vmem:[%s9] sm:$0xff] %vm1594, %v1593
    // Predicated region
    $region54: #{rating_predictor_forward.1} parent=1 // pred_check
      _
    $region55: #{rating_predictor_forward.1} parent=1 // pred_check_branch
      %1597 = sbr.rel (0) target = $region57
    $region56: #{rating_predictor_forward.1} parent=1 // pred_region
      _
    $region57: #{rating_predictor_forward.1} parent=1 // pred_fallthru
      _
    // Predicated region
    $region58: #{rating_predictor_forward.1} parent=1 // pred_check
      _
    $region59: #{rating_predictor_forward.1} parent=1 // pred_check_branch
      %1599 = sbr.rel (0) target = $region61
    $region60: #{rating_predictor_forward.1} parent=1 // pred_region
      _
    $region61: #{rating_predictor_forward.1} parent=1 // pred_fallthru
      _
    %1600 = vsyncpa [#allocation3], 1
    %1601 = vsyncpa [#allocation5], 1
    %1602 = vsyncpa [#allocation8], 1

</llo_original>
